<compile_context>
chip_gen: v5e
topology: v5e:2x2
jax: 0.10.0
libtpu: 0.0.40
codegen_flags: <defaults>
</compile_context>

<pallas_src>
import functools
import math

import jax
import jax.numpy as jnp
import numpy as np
from jax import lax
from jax.experimental import pallas as pl
from jax.experimental.pallas import tpu as pltpu


_WEIGHT_DTYPE = jnp.bfloat16            # MXU operand dtype for large weights
_COMPUTE_DTYPE = jnp.bfloat16           # MXU operand dtype for activations


def _round_up(x, m):
    return (x + m - 1) // m * m


def _largest_divisor_leq(n, cap):
    for d in range(min(n, cap), 0, -1):
        if n % d == 0:
            return d
    return 1


def _pick_bt(B, Sp):
    """Images per grid step: fill ~256 MXU rows but keep >= 2 'parallel' steps."""
    target = max(1, 256 // max(Sp, 1))
    cap = max(1, min(target, B // 2)) if B >= 2 else 1
    return _largest_divisor_leq(B, cap)


def _vmem_cap_bytes():
    """Generation-aware scoped-VMEM cap (3/4 of physical per-core VMEM)."""
    try:
        total = int(pltpu.get_tpu_info().vmem_capacity_bytes)
    except Exception:
        total = 64 * 1024 * 1024        # conservative (v7x-sized) fallback
    return (total * 3) // 4


def _vmem_limit_bytes(bt, Sp, K0, D, Ep, n_heads):
    """Footprint estimate for the fused kernel, clamped to the per-chip cap."""
    f32, bf16 = 4, 2
    rows = bt * Sp
    est = (
        bt * Sp * D * f32                                   # resident residual scratch
        + 2 * bt * Sp * K0 * bf16                           # double-buffered patch block
        + 2 * (K0 * D + D * Ep) * bf16                      # patch weight + projection
        + 2 * Sp * D * f32                                  # cls/PE/bias base rows
        + 2 * (D * 3 * D + D * D + 8 * D * D) * bf16        # dbl-buffered layer weights
        + 2 * (3 * D + D + 4 * D + D + 4 * D) * f32         # biases / LN params
        + rows * (3 * D + 4 * D + 4 * D) * f32              # qkv / mlp intermediates
        + 2 * n_heads * bt * Sp * Sp * f32                  # attention scores / probs
        + 2 * bt * Ep * f32                                 # output block
    )
    return int(min(_vmem_cap_bytes(), max(4 * est, 16 * 1024 * 1024)))


def _layernorm(x, g, b, eps=1e-5):
    mu = jnp.mean(x, axis=-1, keepdims=True)
    var = jnp.mean((x - mu) ** 2, axis=-1, keepdims=True)
    return (x - mu) * lax.rsqrt(var + eps) * g + b


# ----------------------------- Fused Pallas kernel ---------------------------

def fused_vit_kernel(p_ref, pw_ref, base_ref,
                     ln1_g, ln1_b, wqkv, bqkv, wo, bo,
                     ln2_g, ln2_b, w1, b1, w2, b2,
                     proj_ref, out_ref, x_sc,
                     *, n_heads, seq_valid):
    layer = pl.program_id(1)
    last = pl.num_programs(1) - 1
    bt, sp, d = x_sc.shape
    kp = p_ref.shape[-1]
    dk = d // n_heads
    scale = 1.0 / math.sqrt(dk)
    cdt = _COMPUTE_DTYPE

    # ---- first layer step: patch-embed + cls + PE into the resident residual ----
    @pl.when(layer == 0)
    def _():
        p2d = p_ref[...].reshape(bt * sp, kp)
        emb = jnp.dot(p2d, pw_ref[...], preferred_element_type=jnp.float32)
        x_sc[...] = emb.reshape(bt, sp, d) + base_ref[...][None]

    x = x_sc[...]                                                   # (bt, Sp, D) f32

    # ---- multi-head self-attention on LN1(x), fused QKV projection ----
    h = _layernorm(x, ln1_g[0], ln1_b[0]).reshape(bt * sp, d)
    qkv = jnp.dot(h.astype(cdt), wqkv[0],
                  preferred_element_type=jnp.float32) + bqkv[0]     # (bt*Sp, 3D)

    # columns are head-interleaved ([h0: q|k|v][h1: q|k|v]...) -> stack heads on a
    # leading batch axis, then regroup the sublane axis so images are separated.
    qkv_h = jnp.stack([qkv[:, hd * 3 * dk:(hd + 1) * 3 * dk]
                       for hd in range(n_heads)], axis=0)           # (H, bt*Sp, 3dk)
    qkv_h = qkv_h.reshape(n_heads * bt, sp, 3 * dk)                 # (H*bt, Sp, 3dk)
    q = qkv_h[..., 0 * dk:1 * dk]
    k = qkv_h[..., 1 * dk:2 * dk]
    v = qkv_h[..., 2 * dk:3 * dk]

    s = jnp.einsum('zqd,zkd->zqk', q.astype(cdt), k.astype(cdt),
                   preferred_element_type=jnp.float32) * scale      # (H*bt, Sp, Sp)
    key_pos = lax.broadcasted_iota(jnp.int32, (1, 1, sp), 2)
    s = jnp.where(key_pos < seq_valid, s, -1e30)                    # mask padded keys
    s = s - jnp.max(s, axis=-1, keepdims=True)
    pr = jnp.exp(s)
    pr = pr * pl.reciprocal(jnp.sum(pr, axis=-1, keepdims=True), approx=True)

    o = jnp.einsum('zqk,zkd->zqd', pr.astype(cdt), v.astype(cdt),
                   preferred_element_type=jnp.float32)              # (H*bt, Sp, dk)
    o = o.reshape(n_heads, bt * sp, dk)
    attn = jnp.concatenate([o[hd] for hd in range(n_heads)], axis=-1)   # (bt*Sp, D)
    attn = jnp.dot(attn.astype(cdt), wo[0],
                   preferred_element_type=jnp.float32) + bo[0]

    x1 = x + attn.reshape(bt, sp, d)

    # ---- MLP on LN2(x1) ----
    h2 = _layernorm(x1, ln2_g[0], ln2_b[0]).reshape(bt * sp, d)
    m = jnp.dot(h2.astype(cdt), w1[0],
                preferred_element_type=jnp.float32) + b1[0]
    m = 0.5 * m * (1.0 + lax.erf(m * (1.0 / math.sqrt(2.0))))       # exact erf GELU
    m = jnp.dot(m.astype(cdt), w2[0],
                preferred_element_type=jnp.float32) + b2[0]

    x2 = x1 + m.reshape(bt, sp, d)
    x_sc[...] = x2                                                  # carry residual

    # ---- last layer step: project cls token + L2-normalize (lane-dense out) ----
    @pl.when(layer == last)
    def _():
        cls_tok = x2[:, 0, :]                                       # (bt, D)
        y = jnp.dot(cls_tok.astype(cdt), proj_ref[...],
                    preferred_element_type=jnp.float32)             # (bt, Ep)
        out_ref[0] = y * lax.rsqrt(jnp.sum(y * y, axis=-1, keepdims=True) + 1e-12)


# ----------------------------- Forward pass ----------------------------------

def image_encoder_forward(x, packed, patch_size, n_heads, emb_dim):
    B, C, H, W = x.shape
    ph, pw = patch_size
    Hp, Wp = H // ph, W // pw
    Np = Hp * Wp
    K0, D = packed['patch_w'].shape
    Sp = packed['base'].shape[0]
    S = Np + 1                                  # cls + patches (valid sequence)
    L = packed['wqkv'].shape[0]
    Ep = packed['proj'].shape[1]

    bt = _pick_bt(B, Sp)                        # >= 2 grid steps along batch
    nb = B // bt

    # Patch extraction (plain JAX glue): (B,C,H,W) -> (B, Np, C*ph*pw);
    # feature order (c,kh,kw) matches Conv2d weight.reshape(d_model, -1).
    p = x.reshape(B, C, Hp, ph, Wp, pw)
    p = p.transpose(0, 2, 4, 1, 3, 5).reshape(B, Np, K0)
    # Row 0 reserved for the cls token, trailing rows are sequence padding.
    p = jnp.pad(p, ((0, 0), (1, Sp - S), (0, 0))).astype(_COMPUTE_DTYPE)

    vmem_limit = _vmem_limit_bytes(bt, Sp, K0, D, Ep, n_heads)

    def per_layer(a):
        return pl.BlockSpec((1,) + a.shape[1:],
                            lambda b, l, nd=a.ndim: (l,) + (0,) * (nd - 1))

    def shared(a):
        return pl.BlockSpec(a.shape, lambda b, l, nd=a.ndim: (0,) * nd)

    weight_args = [packed['ln1_g'], packed['ln1_b'], packed['wqkv'], packed['bqkv'],
                   packed['wo'], packed['bo'], packed['ln2_g'], packed['ln2_b'],
                   packed['w1'], packed['b1'], packed['w2'], packed['b2']]

    out = pl.pallas_call(
        functools.partial(fused_vit_kernel, n_heads=n_heads, seq_valid=S),
        out_shape=jax.ShapeDtypeStruct((nb, bt, Ep), jnp.float32),
        grid=(nb, L),
        in_specs=[pl.BlockSpec((bt, Sp, K0), lambda b, l: (b, 0, 0)),
                  shared(packed['patch_w']),
                  shared(packed['base'])] +
                 [per_layer(a) for a in weight_args] +
                 [shared(packed['proj'])],
        out_specs=pl.BlockSpec((1, bt, Ep), lambda b, l: (b, 0, 0)),
        scratch_shapes=[pltpu.VMEM((bt, Sp, D), jnp.float32)],
        compiler_params=pltpu.CompilerParams(
            dimension_semantics=("parallel", "arbitrary"),
            vmem_limit_bytes=vmem_limit),
    )(p, packed['patch_w'], packed['base'], *weight_args, packed['proj'])

    # Drop the lane padding of the projection output.
    return out.reshape(B, Ep)[:, :emb_dim]


# ----------------------------- Parameter packing -----------------------------

def pack_params(params, n_heads, emb_dim):
    """One-time layout prep: stacked per-layer weights, fused QKV, padded proj."""
    layers = params['layers']
    D = params['cls'].shape[-1]
    dk = D // n_heads

    def fuse_w(lp):   # head-interleaved QKV columns: [h0: q|k|v][h1: q|k|v]...
        return jnp.concatenate(
            [jnp.concatenate([lp['wq'][:, h * dk:(h + 1) * dk],
                              lp['wk'][:, h * dk:(h + 1) * dk],
                              lp['wv'][:, h * dk:(h + 1) * dk]], axis=1)
             for h in range(n_heads)], axis=1)

    def fuse_b(lp):
        return jnp.concatenate(
            [jnp.concatenate([lp['bq'][:, h * dk:(h + 1) * dk],
                              lp['bk'][:, h * dk:(h + 1) * dk],
                              lp['bv'][:, h * dk:(h + 1) * dk]], axis=1)
             for h in range(n_heads)], axis=1)

    def stack(fn):
        return jnp.stack([fn(lp) for lp in layers], axis=0)

    # Row-additive tensor fusing cls token + positional embedding + conv bias.
    S = params['pe'].shape[1]
    Sp = _round_up(S, 8)
    pe = params['pe'][0]
    base = jnp.zeros((Sp, D), jnp.float32)
    base = base.at[0].set(params['cls'][0, 0] + pe[0])
    base = base.at[1:S].set(pe[1:] + params['patch_b'][0])

    Ep = _round_up(max(emb_dim, 128), 128)
    proj = jnp.pad(params['proj'].astype(_WEIGHT_DTYPE),
                   ((0, 0), (0, Ep - emb_dim)))

    return {
        'patch_w': params['patch_w'].astype(_WEIGHT_DTYPE),   # (K0, D)
        'base': base,                                         # (Sp, D)
        'proj': proj,                                         # (D, Ep)
        'ln1_g': stack(lambda lp: lp['ln1_g']),               # (L, 1, D)
        'ln1_b': stack(lambda lp: lp['ln1_b']),
        'wqkv': stack(fuse_w).astype(_WEIGHT_DTYPE),          # (L, D, 3D)
        'bqkv': stack(fuse_b),                                # (L, 1, 3D)
        'wo': stack(lambda lp: lp['wo']).astype(_WEIGHT_DTYPE),
        'bo': stack(lambda lp: lp['bo']),
        'ln2_g': stack(lambda lp: lp['ln2_g']),
        'ln2_b': stack(lambda lp: lp['ln2_b']),
        'w1': stack(lambda lp: lp['w1']).astype(_WEIGHT_DTYPE),
        'b1': stack(lambda lp: lp['b1']),
        'w2': stack(lambda lp: lp['w2']).astype(_WEIGHT_DTYPE),
        'b2': stack(lambda lp: lp['b2']),
    }


# ----------------------------- Parameters ------------------------------------

def init_params(key, d_model, img_size, patch_size, n_channels, n_layers,
                n_heads, emb_dim):
    Hp = img_size[0] // patch_size[0]
    Wp = img_size[1] // patch_size[1]
    seq_len = Hp * Wp + 1
    keys = jax.random.split(key, 4 + n_layers)

    def nrm(k, shape, scale=0.02, dtype=jnp.float32):
        return (scale * jax.random.normal(k, shape)).astype(dtype)

    wdt = _WEIGHT_DTYPE
    patch_in = n_channels * patch_size[0] * patch_size[1]
    params = {
        'patch_w': nrm(keys[0], (patch_in, d_model), dtype=wdt),      # conv weight^T
        'patch_b': nrm(keys[3], (1, d_model)),
        'cls': nrm(keys[1], (1, 1, d_model), 1.0),
        'proj': nrm(keys[2], (d_model, emb_dim), 1.0, dtype=wdt),
    }

    # Sinusoidal positional embedding (matches PositionalEmbedding exactly)
    pos = np.arange(seq_len)[:, None].astype(np.float64)
    i = np.arange(d_model)[None, :]
    even = (i % 2 == 0)
    expo = np.where(even, i, i - 1) / d_model
    ang = pos / (10000.0 ** expo)
    pe = np.where(even, np.sin(ang), np.cos(ang)).astype(np.float32)
    params['pe'] = jnp.asarray(pe)[None]                              # (1, S, D)

    layers = []
    for l in range(n_layers):
        lk = jax.random.split(keys[4 + l], 12)
        layers.append({
            'ln1_g': jnp.ones((1, d_model), jnp.float32),
            'ln1_b': jnp.zeros((1, d_model), jnp.float32),
            'wq': nrm(lk[0], (d_model, d_model), dtype=wdt),
            'bq': nrm(lk[6], (1, d_model)),
            'wk': nrm(lk[1], (d_model, d_model), dtype=wdt),
            'bk': nrm(lk[7], (1, d_model)),
            'wv': nrm(lk[2], (d_model, d_model), dtype=wdt),
            'bv': nrm(lk[8], (1, d_model)),
            'wo': nrm(lk[3], (d_model, d_model), dtype=wdt),
            'bo': nrm(lk[9], (1, d_model)),
            'ln2_g': jnp.ones((1, d_model), jnp.float32),
            'ln2_b': jnp.zeros((1, d_model), jnp.float32),
            'w1': nrm(lk[4], (d_model, 4 * d_model), dtype=wdt),
            'b1': nrm(lk[10], (1, 4 * d_model)),
            'w2': nrm(lk[5], (4 * d_model, d_model), dtype=wdt),
            'b2': nrm(lk[11], (1, d_model)),
        })
    params['layers'] = layers
    return params


# ----------------------------- Plain-JAX reference ---------------------------

def reference_forward(x, params, patch_size, n_heads):
    f32 = jnp.float32
    B, C, H, W = x.shape
    ph, pw = patch_size
    Hp, Wp = H // ph, W // pw
    D = params['cls'].shape[-1]

    p = x.reshape(B, C, Hp, ph, Wp, pw).transpose(0, 2, 4, 1, 3, 5)
    p = p.reshape(B, Hp * Wp, C * ph * pw)
    emb = p @ params['patch_w'].astype(f32) + params['patch_b']
    cls = jnp.broadcast_to(params['cls'], (B, 1, D))
    xs = jnp.concatenate([cls, emb], axis=1) + params['pe']

    def ln(z, g, b, eps=1e-5):
        mu = z.mean(-1, keepdims=True)
        var = ((z - mu) ** 2).mean(-1, keepdims=True)
        return (z - mu) / jnp.sqrt(var + eps) * g + b

    d_k = D // n_heads
    for lp in params['layers']:
        h = ln(xs, lp['ln1_g'], lp['ln1_b'])
        q = h @ lp['wq'].astype(f32) + lp['bq']
        k = h @ lp['wk'].astype(f32) + lp['bk']
        v = h @ lp['wv'].astype(f32) + lp['bv']
        outs = []
        for hd in range(n_heads):
            sl = slice(hd * d_k, (hd + 1) * d_k)
            s = q[..., sl] @ k[..., sl].transpose(0, 2, 1) / math.sqrt(d_k)
            outs.append(jax.nn.softmax(s, axis=-1) @ v[..., sl])
        xs = xs + (jnp.concatenate(outs, axis=-1) @ lp['wo'].astype(f32) + lp['bo'])
        h2 = ln(xs, lp['ln2_g'], lp['ln2_b'])
        m = h2 @ lp['w1'].astype(f32) + lp['b1']
        m = 0.5 * m * (1.0 + lax.erf(m / math.sqrt(2.0)))
        xs = xs + (m @ lp['w2'].astype(f32) + lp['b2'])

    y = xs[:, 0, :] @ params['proj'].astype(f32)
    return y / jnp.linalg.norm(y, axis=-1, keepdims=True)


# ----------------------------- Main -------------------------------------------

if __name__ == "__main__":
    d_model, n_heads, n_layers, emb_dim = 32, 4, 2, 16
    img_size, patch_size, n_channels = (16, 16), (4, 4), 3
    B = 2  # dropout = 0.0 -> identity, matching eval semantics

    key = jax.random.PRNGKey(0)
    kp, kx = jax.random.split(key)
    params = init_params(kp, d_model, img_size, patch_size, n_channels,
                         n_layers, n_heads, emb_dim)
    x = jax.random.normal(kx, (B, n_channels, *img_size), jnp.float32)

    # One-time weight-layout prep (fused QKV, stacked layers) outside the forward.
    packed = pack_params(params, n_heads, emb_dim)

    fwd = jax.jit(functools.partial(image_encoder_forward,
                                    patch_size=patch_size, n_heads=n_heads,
                                    emb_dim=emb_dim))
    out = jax.block_until_ready(fwd(x, packed))
    assert out.shape == (B, emb_dim)

    ref = reference_forward(x, params, patch_size, n_heads)
    # bf16 MXU operands vs f32 reference (same bf16-valued weights) -> 2e-2 tol
    np.testing.assert_allclose(np.asarray(out), np.asarray(ref),
                               atol=2e-2, rtol=2e-2)
    print("KERNEL_OK")
</pallas_src>

<mosaic_0001>
module attributes {stable_mosaic.version = 11 : i64} {
  func.func @fused_vit_kernel(%arg0: i32, %arg1: i32, %arg2: memref<1x24x48xbf16, #tpu.memory_space<vmem>>, %arg3: memref<48x32xbf16, #tpu.memory_space<vmem>>, %arg4: memref<24x32xf32, #tpu.memory_space<vmem>>, %arg5: memref<1x1x32xf32, #tpu.memory_space<vmem>>, %arg6: memref<1x1x32xf32, #tpu.memory_space<vmem>>, %arg7: memref<1x32x96xbf16, #tpu.memory_space<vmem>>, %arg8: memref<1x1x96xf32, #tpu.memory_space<vmem>>, %arg9: memref<1x32x32xbf16, #tpu.memory_space<vmem>>, %arg10: memref<1x1x32xf32, #tpu.memory_space<vmem>>, %arg11: memref<1x1x32xf32, #tpu.memory_space<vmem>>, %arg12: memref<1x1x32xf32, #tpu.memory_space<vmem>>, %arg13: memref<1x32x128xbf16, #tpu.memory_space<vmem>>, %arg14: memref<1x1x128xf32, #tpu.memory_space<vmem>>, %arg15: memref<1x128x32xbf16, #tpu.memory_space<vmem>>, %arg16: memref<1x1x32xf32, #tpu.memory_space<vmem>>, %arg17: memref<32x128xbf16, #tpu.memory_space<vmem>>, %arg18: memref<1x1x128xf32, #tpu.memory_space<vmem>>, %arg19: memref<1x24x32xf32, #tpu.memory_space<vmem>>) attributes {dimension_semantics = [#tpu.dimension_semantics<parallel>, #tpu.dimension_semantics<arbitrary>], iteration_bounds = array<i64: 2, 2>, scalar_prefetch = 0 : i64, scratch_operands = 1 : i64, tpu.core_type = #tpu.core_type<tc>, window_params = [{transform_indices = @transform_0, window_bounds = array<i64: 1, 24, 48>}, {pipeline_mode = #tpu.pipeline_mode<synchronous>, transform_indices = @transform_1, window_bounds = array<i64: 48, 32>}, {pipeline_mode = #tpu.pipeline_mode<synchronous>, transform_indices = @transform_2, window_bounds = array<i64: 24, 32>}, {transform_indices = @transform_3, window_bounds = array<i64: 1, 1, 32>}, {transform_indices = @transform_4, window_bounds = array<i64: 1, 1, 32>}, {transform_indices = @transform_5, window_bounds = array<i64: 1, 32, 96>}, {transform_indices = @transform_6, window_bounds = array<i64: 1, 1, 96>}, {transform_indices = @transform_7, window_bounds = array<i64: 1, 32, 32>}, {transform_indices = @transform_8, window_bounds = array<i64: 1, 1, 32>}, {transform_indices = @transform_9, window_bounds = array<i64: 1, 1, 32>}, {transform_indices = @transform_10, window_bounds = array<i64: 1, 1, 32>}, {transform_indices = @transform_11, window_bounds = array<i64: 1, 32, 128>}, {transform_indices = @transform_12, window_bounds = array<i64: 1, 1, 128>}, {transform_indices = @transform_13, window_bounds = array<i64: 1, 128, 32>}, {transform_indices = @transform_14, window_bounds = array<i64: 1, 1, 32>}, {pipeline_mode = #tpu.pipeline_mode<synchronous>, transform_indices = @transform_15, window_bounds = array<i64: 32, 128>}, {transform_indices = @transform_16, window_bounds = array<i64: 1, 1, 128>}]} {
    %c0_i32 = arith.constant 0 : i32
    %0 = arith.cmpi eq, %arg1, %c0_i32 : i32
    %1 = arith.extui %0 : i1 to i32
    %c0_i32_0 = arith.constant 0 : i32
    %2 = arith.cmpi ne, %1, %c0_i32_0 : i32
    scf.if %2 {
      %c0_65 = arith.constant 0 : index
      %c0_66 = arith.constant 0 : index
      %c0_67 = arith.constant 0 : index
      %156 = vector.load %arg2[%c0_65, %c0_66, %c0_67] : memref<1x24x48xbf16, #tpu.memory_space<vmem>>, vector<1x24x48xbf16>
      %157 = vector.shape_cast %156 : vector<1x24x48xbf16> to vector<24x48xbf16>
      %c0_68 = arith.constant 0 : index
      %c0_69 = arith.constant 0 : index
      %158 = vector.load %arg3[%c0_68, %c0_69] : memref<48x32xbf16, #tpu.memory_space<vmem>>, vector<48x32xbf16>
      %cst_70 = arith.constant dense<0.000000e+00> : vector<24x32xf32>
      %159 = tpu.matmul %157, %158, %cst_70 {dimension_numbers = #tpu.dot_dimension_numbers<[1], [0], [0], [1], [0, 0, 1, 1], [], []>} : vector<24x48xbf16>, vector<48x32xbf16>, vector<24x32xf32> -> vector<24x32xf32>
      %160 = vector.shape_cast %159 : vector<24x32xf32> to vector<1x24x32xf32>
      %c0_71 = arith.constant 0 : index
      %c0_72 = arith.constant 0 : index
      %161 = vector.load %arg4[%c0_71, %c0_72] : memref<24x32xf32, #tpu.memory_space<vmem>>, vector<24x32xf32>
      %162 = vector.shape_cast %161 : vector<24x32xf32> to vector<1x24x32xf32>
      %163 = arith.addf %160, %162 : vector<1x24x32xf32>
      %c0_73 = arith.constant 0 : index
      %c0_74 = arith.constant 0 : index
      %c0_75 = arith.constant 0 : index
      %164 = vector.load %arg19[%c0_73, %c0_74, %c0_75] : memref<1x24x32xf32, #tpu.memory_space<vmem>>, vector<1x24x32xf32>
      tpu.vector_store %arg19[%c0_73, %c0_74, %c0_75], %163 {strides = array<i32>} : memref<1x24x32xf32, #tpu.memory_space<vmem>>, vector<1x24x32xf32>,
    } else {
    }
    %c0 = arith.constant 0 : index
    %c0_1 = arith.constant 0 : index
    %c0_2 = arith.constant 0 : index
    %3 = vector.load %arg19[%c0, %c0_1, %c0_2] : memref<1x24x32xf32, #tpu.memory_space<vmem>>, vector<1x24x32xf32>
    %c0_3 = arith.constant 0 : index
    %c0_4 = arith.constant 0 : index
    %c0_5 = arith.constant 0 : index
    %4 = vector.load %arg5[%c0_3, %c0_4, %c0_5] : memref<1x1x32xf32, #tpu.memory_space<vmem>>, vector<1x1x32xf32>
    %5 = vector.shape_cast %4 : vector<1x1x32xf32> to vector<1x32xf32>
    %c0_6 = arith.constant 0 : index
    %c0_7 = arith.constant 0 : index
    %c0_8 = arith.constant 0 : index
    %6 = vector.load %arg6[%c0_6, %c0_7, %c0_8] : memref<1x1x32xf32, #tpu.memory_space<vmem>>, vector<1x1x32xf32>
    %7 = vector.shape_cast %6 : vector<1x1x32xf32> to vector<1x32xf32>
    %cst = arith.constant dense<0.000000e+00> : vector<1x24xf32>
    %8 = vector.multi_reduction <add>, %3, %cst [2] : vector<1x24x32xf32> to vector<1x24xf32>
    %9 = vector.shape_cast %8 : vector<1x24xf32> to vector<1x24x1xf32>
    %cst_9 = arith.constant 3.200000e+01 : f32
    %10 = vector.broadcast %cst_9 : f32 to vector<1x24x1xf32>
    %11 = arith.divf %9, %10 : vector<1x24x1xf32>
    %12 = vector.broadcast %11 : vector<1x24x1xf32> to vector<1x24x32xf32>
    %13 = arith.subf %3, %12 : vector<1x24x32xf32>
    %14 = arith.mulf %13, %13 : vector<1x24x32xf32>
    %cst_10 = arith.constant dense<0.000000e+00> : vector<1x24xf32>
    %15 = vector.multi_reduction <add>, %14, %cst_10 [2] : vector<1x24x32xf32> to vector<1x24xf32>
    %16 = vector.shape_cast %15 : vector<1x24xf32> to vector<1x24x1xf32>
    %cst_11 = arith.constant 3.200000e+01 : f32
    %17 = vector.broadcast %cst_11 : f32 to vector<1x24x1xf32>
    %18 = arith.divf %16, %17 : vector<1x24x1xf32>
    %19 = vector.broadcast %11 : vector<1x24x1xf32> to vector<1x24x32xf32>
    %20 = arith.subf %3, %19 : vector<1x24x32xf32>
    %cst_12 = arith.constant 9.99999974E-6 : f32
    %21 = vector.broadcast %cst_12 : f32 to vector<1x24x1xf32>
    %22 = arith.addf %18, %21 : vector<1x24x1xf32>
    %23 = math.rsqrt %22 : vector<1x24x1xf32>
    %24 = vector.broadcast %23 : vector<1x24x1xf32> to vector<1x24x32xf32>
    %25 = arith.mulf %20, %24 : vector<1x24x32xf32>
    %26 = vector.shape_cast %5 : vector<1x32xf32> to vector<1x1x32xf32>
    %27 = vector.broadcast %26 : vector<1x1x32xf32> to vector<1x24x32xf32>
    %28 = arith.mulf %25, %27 : vector<1x24x32xf32>
    %29 = vector.shape_cast %7 : vector<1x32xf32> to vector<1x1x32xf32>
    %30 = vector.broadcast %29 : vector<1x1x32xf32> to vector<1x24x32xf32>
    %31 = arith.addf %28, %30 : vector<1x24x32xf32>
    %32 = vector.shape_cast %31 : vector<1x24x32xf32> to vector<24x32xf32>
    %33 = arith.truncf %32 : vector<24x32xf32> to vector<24x32xbf16>
    %c0_13 = arith.constant 0 : index
    %c0_14 = arith.constant 0 : index
    %c0_15 = arith.constant 0 : index
    %34 = vector.load %arg7[%c0_13, %c0_14, %c0_15] : memref<1x32x96xbf16, #tpu.memory_space<vmem>>, vector<1x32x96xbf16>
    %35 = vector.shape_cast %34 : vector<1x32x96xbf16> to vector<32x96xbf16>
    %cst_16 = arith.constant dense<0.000000e+00> : vector<24x96xf32>
    %36 = tpu.matmul %33, %35, %cst_16 {dimension_numbers = #tpu.dot_dimension_numbers<[1], [0], [0], [1], [0, 0, 1, 1], [], []>} : vector<24x32xbf16>, vector<32x96xbf16>, vector<24x96xf32> -> vector<24x96xf32>
    %c0_17 = arith.constant 0 : index
    %c0_18 = arith.constant 0 : index
    %c0_19 = arith.constant 0 : index
    %37 = vector.load %arg8[%c0_17, %c0_18, %c0_19] : memref<1x1x96xf32, #tpu.memory_space<vmem>>, vector<1x1x96xf32>
    %38 = vector.shape_cast %37 : vector<1x1x96xf32> to vector<1x96xf32>
    %39 = vector.broadcast %38 : vector<1x96xf32> to vector<24x96xf32>
    %40 = arith.addf %36, %39 : vector<24x96xf32>
    %41 = vector.extract_strided_slice %40 {offsets = [0, 0], sizes = [24, 24], strides = [1, 1]} : vector<24x96xf32> to vector<24x24xf32>
    %42 = vector.extract_strided_slice %40 {offsets = [0, 24], sizes = [24, 24], strides = [1, 1]} : vector<24x96xf32> to vector<24x24xf32>
    %43 = vector.extract_strided_slice %40 {offsets = [0, 48], sizes = [24, 24], strides = [1, 1]} : vector<24x96xf32> to vector<24x24xf32>
    %44 = vector.extract_strided_slice %40 {offsets = [0, 72], sizes = [24, 24], strides = [1, 1]} : vector<24x96xf32> to vector<24x24xf32>
    %45 = vector.shape_cast %41 : vector<24x24xf32> to vector<1x24x24xf32>
    %46 = vector.shape_cast %42 : vector<24x24xf32> to vector<1x24x24xf32>
    %47 = vector.shape_cast %43 : vector<24x24xf32> to vector<1x24x24xf32>
    %48 = vector.shape_cast %44 : vector<24x24xf32> to vector<1x24x24xf32>
    %49 = tpu.concatenate %45, %46, %47, %48 in 0 : vector<1x24x24xf32>, vector<1x24x24xf32>, vector<1x24x24xf32>, vector<1x24x24xf32> -> vector<4x24x24xf32>
    %50 = vector.extract_strided_slice %49 {offsets = [0, 0, 0], sizes = [4, 24, 8], strides = [1, 1, 1]} : vector<4x24x24xf32> to vector<4x24x8xf32>
    %51 = vector.extract_strided_slice %49 {offsets = [0, 0, 8], sizes = [4, 24, 8], strides = [1, 1, 1]} : vector<4x24x24xf32> to vector<4x24x8xf32>
    %52 = vector.extract_strided_slice %49 {offsets = [0, 0, 16], sizes = [4, 24, 8], strides = [1, 1, 1]} : vector<4x24x24xf32> to vector<4x24x8xf32>
    %53 = arith.truncf %50 : vector<4x24x8xf32> to vector<4x24x8xbf16>
    %54 = arith.truncf %51 : vector<4x24x8xf32> to vector<4x24x8xbf16>
    "tpu.trace_start"() <{level = 10 : i32, message = "zqd,zkd->zqk"}> : () -> ()
    %cst_20 = arith.constant dense<0.000000e+00> : vector<4x24x24xf32>
    %55 = tpu.matmul %53, %54, %cst_20 {dimension_numbers = #tpu.dot_dimension_numbers<[2], [2], [1], [1], [0, 0, 0, 1, 1, 1], [0], [0]>} : vector<4x24x8xbf16>, vector<4x24x8xbf16>, vector<4x24x24xf32> -> vector<4x24x24xf32>
    "tpu.trace_stop"() : () -> ()
    %cst_21 = arith.constant 0.353553385 : f32
    %56 = vector.broadcast %cst_21 : f32 to vector<4x24x24xf32>
    %57 = arith.mulf %55, %56 : vector<4x24x24xf32>
    %58 = tpu.iota {dimensions = array<i32: 2>} : vector<1x1x24xi32>
    %c17_i32 = arith.constant 17 : i32
    %59 = vector.broadcast %c17_i32 : i32 to vector<1x1x24xi32>
    %60 = arith.cmpi slt, %58, %59 : vector<1x1x24xi32>
    %cst_22 = arith.constant -1.000000e+30 : f32
    %61 = vector.shape_cast %60 : vector<1x1x24xi1> to vector<1x1x24xi1>
    %62 = vector.broadcast %61 : vector<1x1x24xi1> to vector<4x24x24xi1>
    %63 = vector.broadcast %cst_22 : f32 to vector<4x24x24xf32>
    %64 = arith.select %62, %57, %63 : vector<4x24x24xi1>, vector<4x24x24xf32>
    %cst_23 = arith.constant dense<0xFF800000> : vector<4x24xf32>
    %65 = vector.multi_reduction <maximumf>, %64, %cst_23 [2] : vector<4x24x24xf32> to vector<4x24xf32>
    %66 = vector.shape_cast %65 : vector<4x24xf32> to vector<4x24x1xf32>
    %67 = vector.broadcast %66 : vector<4x24x1xf32> to vector<4x24x24xf32>
    %68 = arith.subf %64, %67 : vector<4x24x24xf32>
    %69 = math.exp %68 : vector<4x24x24xf32>
    %cst_24 = arith.constant dense<0.000000e+00> : vector<4x24xf32>
    %70 = vector.multi_reduction <add>, %69, %cst_24 [2] : vector<4x24x24xf32> to vector<4x24xf32>
    %71 = vector.shape_cast %70 : vector<4x24xf32> to vector<4x24x1xf32>
    %72 = tpu.reciprocal %71 {approx = true} : vector<4x24x1xf32> -> vector<4x24x1xf32>
    %73 = vector.broadcast %72 : vector<4x24x1xf32> to vector<4x24x24xf32>
    %74 = arith.mulf %69, %73 : vector<4x24x24xf32>
    %75 = arith.truncf %74 : vector<4x24x24xf32> to vector<4x24x24xbf16>
    %76 = arith.truncf %52 : vector<4x24x8xf32> to vector<4x24x8xbf16>
    "tpu.trace_start"() <{level = 10 : i32, message = "zqk,zkd->zqd"}> : () -> ()
    %cst_25 = arith.constant dense<0.000000e+00> : vector<4x24x8xf32>
    %77 = tpu.matmul %75, %76, %cst_25 {dimension_numbers = #tpu.dot_dimension_numbers<[2], [1], [1], [2], [0, 0, 0, 1, 1, 2], [0], [0]>} : vector<4x24x24xbf16>, vector<4x24x8xbf16>, vector<4x24x8xf32> -> vector<4x24x8xf32>
    "tpu.trace_stop"() : () -> ()
    %78 = vector.extract_strided_slice %77 {offsets = [0, 0, 0], sizes = [1, 24, 8], strides = [1, 1, 1]} : vector<4x24x8xf32> to vector<1x24x8xf32>
    %79 = vector.shape_cast %78 : vector<1x24x8xf32> to vector<24x8xf32>
    %80 = vector.extract_strided_slice %77 {offsets = [1, 0, 0], sizes = [1, 24, 8], strides = [1, 1, 1]} : vector<4x24x8xf32> to vector<1x24x8xf32>
    %81 = vector.shape_cast %80 : vector<1x24x8xf32> to vector<24x8xf32>
    %82 = vector.extract_strided_slice %77 {offsets = [2, 0, 0], sizes = [1, 24, 8], strides = [1, 1, 1]} : vector<4x24x8xf32> to vector<1x24x8xf32>
    %83 = vector.shape_cast %82 : vector<1x24x8xf32> to vector<24x8xf32>
    %84 = vector.extract_strided_slice %77 {offsets = [3, 0, 0], sizes = [1, 24, 8], strides = [1, 1, 1]} : vector<4x24x8xf32> to vector<1x24x8xf32>
    %85 = vector.shape_cast %84 : vector<1x24x8xf32> to vector<24x8xf32>
    %86 = tpu.concatenate %79, %81, %83, %85 in 1 : vector<24x8xf32>, vector<24x8xf32>, vector<24x8xf32>, vector<24x8xf32> -> vector<24x32xf32>
    %87 = arith.truncf %86 : vector<24x32xf32> to vector<24x32xbf16>
    %c0_26 = arith.constant 0 : index
    %c0_27 = arith.constant 0 : index
    %c0_28 = arith.constant 0 : index
    %88 = vector.load %arg9[%c0_26, %c0_27, %c0_28] : memref<1x32x32xbf16, #tpu.memory_space<vmem>>, vector<1x32x32xbf16>
    %89 = vector.shape_cast %88 : vector<1x32x32xbf16> to vector<32x32xbf16>
    %cst_29 = arith.constant dense<0.000000e+00> : vector<24x32xf32>
    %90 = tpu.matmul %87, %89, %cst_29 {dimension_numbers = #tpu.dot_dimension_numbers<[1], [0], [0], [1], [0, 0, 1, 1], [], []>} : vector<24x32xbf16>, vector<32x32xbf16>, vector<24x32xf32> -> vector<24x32xf32>
    %c0_30 = arith.constant 0 : index
    %c0_31 = arith.constant 0 : index
    %c0_32 = arith.constant 0 : index
    %91 = vector.load %arg10[%c0_30, %c0_31, %c0_32] : memref<1x1x32xf32, #tpu.memory_space<vmem>>, vector<1x1x32xf32>
    %92 = vector.shape_cast %91 : vector<1x1x32xf32> to vector<1x32xf32>
    %93 = vector.broadcast %92 : vector<1x32xf32> to vector<24x32xf32>
    %94 = arith.addf %90, %93 : vector<24x32xf32>
    %95 = vector.shape_cast %94 : vector<24x32xf32> to vector<1x24x32xf32>
    %96 = arith.addf %3, %95 : vector<1x24x32xf32>
    %c0_33 = arith.constant 0 : index
    %c0_34 = arith.constant 0 : index
    %c0_35 = arith.constant 0 : index
    %97 = vector.load %arg11[%c0_33, %c0_34, %c0_35] : memref<1x1x32xf32, #tpu.memory_space<vmem>>, vector<1x1x32xf32>
    %98 = vector.shape_cast %97 : vector<1x1x32xf32> to vector<1x32xf32>
    %c0_36 = arith.constant 0 : index
    %c0_37 = arith.constant 0 : index
    %c0_38 = arith.constant 0 : index
    %99 = vector.load %arg12[%c0_36, %c0_37, %c0_38] : memref<1x1x32xf32, #tpu.memory_space<vmem>>, vector<1x1x32xf32>
    %100 = vector.shape_cast %99 : vector<1x1x32xf32> to vector<1x32xf32>
    %cst_39 = arith.constant dense<0.000000e+00> : vector<1x24xf32>
    %101 = vector.multi_reduction <add>, %96, %cst_39 [2] : vector<1x24x32xf32> to vector<1x24xf32>
    %102 = vector.shape_cast %101 : vector<1x24xf32> to vector<1x24x1xf32>
    %cst_40 = arith.constant 3.200000e+01 : f32
    %103 = vector.broadcast %cst_40 : f32 to vector<1x24x1xf32>
    %104 = arith.divf %102, %103 : vector<1x24x1xf32>
    %105 = vector.broadcast %104 : vector<1x24x1xf32> to vector<1x24x32xf32>
    %106 = arith.subf %96, %105 : vector<1x24x32xf32>
    %107 = arith.mulf %106, %106 : vector<1x24x32xf32>
    %cst_41 = arith.constant dense<0.000000e+00> : vector<1x24xf32>
    %108 = vector.multi_reduction <add>, %107, %cst_41 [2] : vector<1x24x32xf32> to vector<1x24xf32>
    %109 = vector.shape_cast %108 : vector<1x24xf32> to vector<1x24x1xf32>
    %cst_42 = arith.constant 3.200000e+01 : f32
    %110 = vector.broadcast %cst_42 : f32 to vector<1x24x1xf32>
    %111 = arith.divf %109, %110 : vector<1x24x1xf32>
    %112 = vector.broadcast %104 : vector<1x24x1xf32> to vector<1x24x32xf32>
    %113 = arith.subf %96, %112 : vector<1x24x32xf32>
    %cst_43 = arith.constant 9.99999974E-6 : f32
    %114 = vector.broadcast %cst_43 : f32 to vector<1x24x1xf32>
    %115 = arith.addf %111, %114 : vector<1x24x1xf32>
    %116 = math.rsqrt %115 : vector<1x24x1xf32>
    %117 = vector.broadcast %116 : vector<1x24x1xf32> to vector<1x24x32xf32>
    %118 = arith.mulf %113, %117 : vector<1x24x32xf32>
    %119 = vector.shape_cast %98 : vector<1x32xf32> to vector<1x1x32xf32>
    %120 = vector.broadcast %119 : vector<1x1x32xf32> to vector<1x24x32xf32>
    %121 = arith.mulf %118, %120 : vector<1x24x32xf32>
    %122 = vector.shape_cast %100 : vector<1x32xf32> to vector<1x1x32xf32>
    %123 = vector.broadcast %122 : vector<1x1x32xf32> to vector<1x24x32xf32>
    %124 = arith.addf %121, %123 : vector<1x24x32xf32>
    %125 = vector.shape_cast %124 : vector<1x24x32xf32> to vector<24x32xf32>
    %126 = arith.truncf %125 : vector<24x32xf32> to vector<24x32xbf16>
    %c0_44 = arith.constant 0 : index
    %c0_45 = arith.constant 0 : index
    %c0_46 = arith.constant 0 : index
    %127 = vector.load %arg13[%c0_44, %c0_45, %c0_46] : memref<1x32x128xbf16, #tpu.memory_space<vmem>>, vector<1x32x128xbf16>
    %128 = vector.shape_cast %127 : vector<1x32x128xbf16> to vector<32x128xbf16>
    %cst_47 = arith.constant dense<0.000000e+00> : vector<24x128xf32>
    %129 = tpu.matmul %126, %128, %cst_47 {dimension_numbers = #tpu.dot_dimension_numbers<[1], [0], [0], [1], [0, 0, 1, 1], [], []>} : vector<24x32xbf16>, vector<32x128xbf16>, vector<24x128xf32> -> vector<24x128xf32>
    %c0_48 = arith.constant 0 : index
    %c0_49 = arith.constant 0 : index
    %c0_50 = arith.constant 0 : index
    %130 = vector.load %arg14[%c0_48, %c0_49, %c0_50] : memref<1x1x128xf32, #tpu.memory_space<vmem>>, vector<1x1x128xf32>
    %131 = vector.shape_cast %130 : vector<1x1x128xf32> to vector<1x128xf32>
    %132 = vector.broadcast %131 : vector<1x128xf32> to vector<24x128xf32>
    %133 = arith.addf %129, %132 : vector<24x128xf32>
    %cst_51 = arith.constant 5.000000e-01 : f32
    %134 = vector.broadcast %cst_51 : f32 to vector<24x128xf32>
    %135 = arith.mulf %134, %133 : vector<24x128xf32>
    %cst_52 = arith.constant 0.707106769 : f32
    %136 = vector.broadcast %cst_52 : f32 to vector<24x128xf32>
    %137 = arith.mulf %133, %136 : vector<24x128xf32>
    %138 = math.erf %137 : vector<24x128xf32>
    %cst_53 = arith.constant 1.000000e+00 : f32
    %139 = vector.broadcast %cst_53 : f32 to vector<24x128xf32>
    %140 = arith.addf %139, %138 : vector<24x128xf32>
    %141 = arith.mulf %135, %140 : vector<24x128xf32>
    %142 = arith.truncf %141 : vector<24x128xf32> to vector<24x128xbf16>
    %c0_54 = arith.constant 0 : index
    %c0_55 = arith.constant 0 : index
    %c0_56 = arith.constant 0 : index
    %143 = vector.load %arg15[%c0_54, %c0_55, %c0_56] : memref<1x128x32xbf16, #tpu.memory_space<vmem>>, vector<1x128x32xbf16>
    %144 = vector.shape_cast %143 : vector<1x128x32xbf16> to vector<128x32xbf16>
    %cst_57 = arith.constant dense<0.000000e+00> : vector<24x32xf32>
    %145 = tpu.matmul %142, %144, %cst_57 {dimension_numbers = #tpu.dot_dimension_numbers<[1], [0], [0], [1], [0, 0, 1, 1], [], []>} : vector<24x128xbf16>, vector<128x32xbf16>, vector<24x32xf32> -> vector<24x32xf32>
    %c0_58 = arith.constant 0 : index
    %c0_59 = arith.constant 0 : index
    %c0_60 = arith.constant 0 : index
    %146 = vector.load %arg16[%c0_58, %c0_59, %c0_60] : memref<1x1x32xf32, #tpu.memory_space<vmem>>, vector<1x1x32xf32>
    %147 = vector.shape_cast %146 : vector<1x1x32xf32> to vector<1x32xf32>
    %148 = vector.broadcast %147 : vector<1x32xf32> to vector<24x32xf32>
    %149 = arith.addf %145, %148 : vector<24x32xf32>
    %150 = vector.shape_cast %149 : vector<24x32xf32> to vector<1x24x32xf32>
    %151 = arith.addf %96, %150 : vector<1x24x32xf32>
    %c0_61 = arith.constant 0 : index
    %c0_62 = arith.constant 0 : index
    %c0_63 = arith.constant 0 : index
    %152 = vector.load %arg19[%c0_61, %c0_62, %c0_63] : memref<1x24x32xf32, #tpu.memory_space<vmem>>, vector<1x24x32xf32>
    tpu.vector_store %arg19[%c0_61, %c0_62, %c0_63], %151 {strides = array<i32>} : memref<1x24x32xf32, #tpu.memory_space<vmem>>, vector<1x24x32xf32>,
    %c1_i32 = arith.constant 1 : i32
    %153 = arith.cmpi eq, %arg1, %c1_i32 : i32
    %154 = arith.extui %153 : i1 to i32
    %c0_i32_64 = arith.constant 0 : i32
    %155 = arith.cmpi ne, %154, %c0_i32_64 : i32
    scf.if %155 {
      %156 = vector.extract_strided_slice %151 {offsets = [0, 0, 0], sizes = [1, 1, 32], strides = [1, 1, 1]} : vector<1x24x32xf32> to vector<1x1x32xf32>
      %157 = vector.shape_cast %156 : vector<1x1x32xf32> to vector<1x32xf32>
      %158 = arith.truncf %157 : vector<1x32xf32> to vector<1x32xbf16>
      %c0_65 = arith.constant 0 : index
      %c0_66 = arith.constant 0 : index
      %159 = vector.load %arg17[%c0_65, %c0_66] : memref<32x128xbf16, #tpu.memory_space<vmem>>, vector<32x128xbf16>
      %cst_67 = arith.constant dense<0.000000e+00> : vector<1x128xf32>
      %160 = tpu.matmul %158, %159, %cst_67 {dimension_numbers = #tpu.dot_dimension_numbers<[1], [0], [0], [1], [0, 0, 1, 1], [], []>} : vector<1x32xbf16>, vector<32x128xbf16>, vector<1x128xf32> -> vector<1x128xf32>
      %161 = arith.mulf %160, %160 : vector<1x128xf32>
      %cst_68 = arith.constant dense<0.000000e+00> : vector<1xf32>
      %162 = vector.multi_reduction <add>, %161, %cst_68 [1] : vector<1x128xf32> to vector<1xf32>
      %163 = vector.shape_cast %162 : vector<1xf32> to vector<1x1xf32>
      %cst_69 = arith.constant 9.99999996E-13 : f32
      %164 = vector.broadcast %cst_69 : f32 to vector<1x1xf32>
      %165 = arith.addf %163, %164 : vector<1x1xf32>
      %166 = math.rsqrt %165 : vector<1x1xf32>
      %167 = vector.broadcast %166 : vector<1x1xf32> to vector<1x128xf32>
      %168 = arith.mulf %160, %167 : vector<1x128xf32>
      %c0_70 = arith.constant 0 : index
      %c0_71 = arith.constant 0 : index
      %c0_72 = arith.constant 0 : index
      %169 = vector.load %arg18[%c0_70, %c0_71, %c0_72] : memref<1x1x128xf32, #tpu.memory_space<vmem>>, vector<1x1x128xf32>
      %170 = vector.shape_cast %169 : vector<1x1x128xf32> to vector<1x128xf32>
      %171 = vector.shape_cast %168 : vector<1x128xf32> to vector<1x1x128xf32>
      tpu.vector_store %arg18[%c0_70, %c0_71, %c0_72], %171 {strides = array<i32>} : memref<1x1x128xf32, #tpu.memory_space<vmem>>, vector<1x1x128xf32>,
    } else {
    }
    return
  }
  func.func @transform_0(%arg0: i32, %arg1: i32) -> (i32, i32, i32) {
    %c0_i32 = arith.constant 0 : i32
    %c0_i32_0 = arith.constant 0 : i32
    %c0_i32_1 = arith.constant 0 : i32
    return %arg0, %c0_i32, %c0_i32_0 : i32, i32, i32
  }
  func.func @transform_1(%arg0: i32, %arg1: i32) -> (i32, i32) {
    %c0_i32 = arith.constant 0 : i32
    %c0_i32_0 = arith.constant 0 : i32
    %c0_i32_1 = arith.constant 0 : i32
    return %c0_i32, %c0_i32_0 : i32, i32
  }
  func.func @transform_2(%arg0: i32, %arg1: i32) -> (i32, i32) {
    %c0_i32 = arith.constant 0 : i32
    %c0_i32_0 = arith.constant 0 : i32
    %c0_i32_1 = arith.constant 0 : i32
    return %c0_i32, %c0_i32_0 : i32, i32
  }
  func.func @transform_3(%arg0: i32, %arg1: i32) -> (i32, i32, i32) {
    %c0_i32 = arith.constant 0 : i32
    %c0_i32_0 = arith.constant 0 : i32
    %c0_i32_1 = arith.constant 0 : i32
    return %arg1, %c0_i32, %c0_i32_0 : i32, i32, i32
  }
  func.func @transform_4(%arg0: i32, %arg1: i32) -> (i32, i32, i32) {
    %c0_i32 = arith.constant 0 : i32
    %c0_i32_0 = arith.constant 0 : i32
    %c0_i32_1 = arith.constant 0 : i32
    return %arg1, %c0_i32, %c0_i32_0 : i32, i32, i32
  }
  func.func @transform_5(%arg0: i32, %arg1: i32) -> (i32, i32, i32) {
    %c0_i32 = arith.constant 0 : i32
    %c0_i32_0 = arith.constant 0 : i32
    %c0_i32_1 = arith.constant 0 : i32
    return %arg1, %c0_i32, %c0_i32_0 : i32, i32, i32
  }
  func.func @transform_6(%arg0: i32, %arg1: i32) -> (i32, i32, i32) {
    %c0_i32 = arith.constant 0 : i32
    %c0_i32_0 = arith.constant 0 : i32
    %c0_i32_1 = arith.constant 0 : i32
    return %arg1, %c0_i32, %c0_i32_0 : i32, i32, i32
  }
  func.func @transform_7(%arg0: i32, %arg1: i32) -> (i32, i32, i32) {
    %c0_i32 = arith.constant 0 : i32
    %c0_i32_0 = arith.constant 0 : i32
    %c0_i32_1 = arith.constant 0 : i32
    return %arg1, %c0_i32, %c0_i32_0 : i32, i32, i32
  }
  func.func @transform_8(%arg0: i32, %arg1: i32) -> (i32, i32, i32) {
    %c0_i32 = arith.constant 0 : i32
    %c0_i32_0 = arith.constant 0 : i32
    %c0_i32_1 = arith.constant 0 : i32
    return %arg1, %c0_i32, %c0_i32_0 : i32, i32, i32
  }
  func.func @transform_9(%arg0: i32, %arg1: i32) -> (i32, i32, i32) {
    %c0_i32 = arith.constant 0 : i32
    %c0_i32_0 = arith.constant 0 : i32
    %c0_i32_1 = arith.constant 0 : i32
    return %arg1, %c0_i32, %c0_i32_0 : i32, i32, i32
  }
  func.func @transform_10(%arg0: i32, %arg1: i32) -> (i32, i32, i32) {
    %c0_i32 = arith.constant 0 : i32
    %c0_i32_0 = arith.constant 0 : i32
    %c0_i32_1 = arith.constant 0 : i32
    return %arg1, %c0_i32, %c0_i32_0 : i32, i32, i32
  }
  func.func @transform_11(%arg0: i32, %arg1: i32) -> (i32, i32, i32) {
    %c0_i32 = arith.constant 0 : i32
    %c0_i32_0 = arith.constant 0 : i32
    %c0_i32_1 = arith.constant 0 : i32
    return %arg1, %c0_i32, %c0_i32_0 : i32, i32, i32
  }
  func.func @transform_12(%arg0: i32, %arg1: i32) -> (i32, i32, i32) {
    %c0_i32 = arith.constant 0 : i32
    %c0_i32_0 = arith.constant 0 : i32
    %c0_i32_1 = arith.constant 0 : i32
    return %arg1, %c0_i32, %c0_i32_0 : i32, i32, i32
  }
  func.func @transform_13(%arg0: i32, %arg1: i32) -> (i32, i32, i32) {
    %c0_i32 = arith.constant 0 : i32
    %c0_i32_0 = arith.constant 0 : i32
    %c0_i32_1 = arith.constant 0 : i32
    return %arg1, %c0_i32, %c0_i32_0 : i32, i32, i32
  }
  func.func @transform_14(%arg0: i32, %arg1: i32) -> (i32, i32, i32) {
    %c0_i32 = arith.constant 0 : i32
    %c0_i32_0 = arith.constant 0 : i32
    %c0_i32_1 = arith.constant 0 : i32
    return %arg1, %c0_i32, %c0_i32_0 : i32, i32, i32
  }
  func.func @transform_15(%arg0: i32, %arg1: i32) -> (i32, i32) {
    %c0_i32 = arith.constant 0 : i32
    %c0_i32_0 = arith.constant 0 : i32
    %c0_i32_1 = arith.constant 0 : i32
    return %c0_i32, %c0_i32_0 : i32, i32
  }
  func.func @transform_16(%arg0: i32, %arg1: i32) -> (i32, i32, i32) {
    %c0_i32 = arith.constant 0 : i32
    %c0_i32_0 = arith.constant 0 : i32
    %c0_i32_1 = arith.constant 0 : i32
    return %arg0, %c0_i32, %c0_i32_0 : i32, i32, i32
  }
}

</mosaic_0001>

<llo_original>
// kernel: image_encoder_forward.1
$region0: #{image_encoder_forward.1}
  #allocation0 [shape = 'u32[]', space=smem, size = 0x4, offset = 0x4, fixed_abs, tag = 'smem constant byte address 0x4 - core index']
  #allocation1 [shape = 'u32[72,128]{1,0:T(1,128)}', space=vmem, size = 0x9000, scoped, tag = 'internal scratch']
  #allocation2 [shape = 'f32[1,24,32]{2,1,0:T(8,128)}', space=vmem, size = 0x3000, scoped, tag = 'scratch operand']
  %s0 = inlined_call_operand.vmem [shape: bf16[2,24,48], index: 0, kind: input, shape index: {}]
  %s1 = inlined_call_operand.vmem [shape: bf16[48,32], index: 1, kind: input, shape index: {}]
  %s2 = inlined_call_operand.vmem [shape: f32[24,32], index: 2, kind: input, shape index: {}]
  %s3 = inlined_call_operand.vmem [shape: f32[2,1,32], index: 3, kind: input, shape index: {}]
  %s4 = inlined_call_operand.vmem [shape: f32[2,1,32], index: 4, kind: input, shape index: {}]
  %s5 = inlined_call_operand.vmem [shape: bf16[2,32,96], index: 5, kind: input, shape index: {}]
  %s6 = inlined_call_operand.vmem [shape: f32[2,1,96], index: 6, kind: input, shape index: {}]
  %s7 = inlined_call_operand.vmem [shape: bf16[2,32,32], index: 7, kind: input, shape index: {}]
  %s8 = inlined_call_operand.vmem [shape: f32[2,1,32], index: 8, kind: input, shape index: {}]
  %s9 = inlined_call_operand.vmem [shape: f32[2,1,32], index: 9, kind: input, shape index: {}]
  %s10 = inlined_call_operand.vmem [shape: f32[2,1,32], index: 10, kind: input, shape index: {}]
  %s11 = inlined_call_operand.vmem [shape: bf16[2,32,128], index: 11, kind: input, shape index: {}]
  %s12 = inlined_call_operand.vmem [shape: f32[2,1,128], index: 12, kind: input, shape index: {}]
  %s13 = inlined_call_operand.vmem [shape: bf16[2,128,32], index: 13, kind: input, shape index: {}]
  %s14 = inlined_call_operand.vmem [shape: f32[2,1,32], index: 14, kind: input, shape index: {}]
  %s15 = inlined_call_operand.vmem [shape: bf16[32,128], index: 15, kind: input, shape index: {}]
  %s16 = inlined_call_operand.hbm [shape: f32[2,1,128], index: 16, kind: output, shape index: {}]
  %s17 = sld [smem:[#allocation0]]
  $region105: #{image_encoder_forward.1} parent=0
    _
  %s19 = ssub.s32 1, %s17
  %s20 = scalar_select 0, %s19, %s17
  $region1: #{image_encoder_forward.1} parent=0
    #allocation3 [shape = 'u8[1024]{0}', space=vmem, size = 0x400, scoped, tag = 'output window, operand 0']
    #allocation4 [shape = 's32[2]{0}', space=sflag, size = 0x8, scoped, tag = 'scoped memory for image_encoder_forward.1']
    %21 = vsyncpa [#allocation4], 0
    %s22 = scalar_lea.sflag [#allocation4], 1
    %23 = vsyncpa %s22, 0
    loop: start=0, step=1, limit=6
    $region2: #{image_encoder_forward.1} parent=1 // loop_pre_header
      _
    $region3: #{image_encoder_forward.1} parent=1 // loop_header
      %s25 = sphi 0, %s29
      %p26 = scmp.ge.s32.totalorder %s25, 6
      %s32 = sphi 0, %s44
      %s33 = sphi 0, %s40
      %s34 = sphi 0, %s32
      %s35 = sphi 0, %s33
      %s36 = sphi 0, %s34
      %s37 = sphi 0, %s35
      %s47 = sphi 0, %s49
      %s50 = sphi 0, %s47
      %s51 = sphi 0, %s50
      %s67 = sphi 0, %s51
      %s71 = sphi 0, %s71
      %s73 = sphi 0, %s71
      %s74 = sphi 0, %s73
      %s88 = sphi 0, %s74
      %s92 = sphi 0, %s92
      %s94 = sphi 0, %s92
      %s95 = sphi 0, %s94
      %s109 = sphi 0, %s95
      %s115 = sphi 0, %s117
      %s118 = sphi 0, %s115
      %s119 = sphi 0, %s118
      %s135 = sphi 0, %s119
      %s141 = sphi 0, %s143
      %s144 = sphi 0, %s141
      %s145 = sphi 0, %s144
      %s161 = sphi 0, %s145
      %s167 = sphi 0, %s169
      %s170 = sphi 0, %s167
      %s171 = sphi 0, %s170
      %s187 = sphi 0, %s171
      %s193 = sphi 0, %s195
      %s196 = sphi 0, %s193
      %s197 = sphi 0, %s196
      %s213 = sphi 0, %s197
      %s219 = sphi 0, %s221
      %s222 = sphi 0, %s219
      %s223 = sphi 0, %s222
      %s239 = sphi 0, %s223
      %s245 = sphi 0, %s247
      %s248 = sphi 0, %s245
      %s249 = sphi 0, %s248
      %s265 = sphi 0, %s249
      %s271 = sphi 0, %s273
      %s274 = sphi 0, %s271
      %s275 = sphi 0, %s274
      %s291 = sphi 0, %s275
      %s297 = sphi 0, %s299
      %s300 = sphi 0, %s297
      %s301 = sphi 0, %s300
      %s317 = sphi 0, %s301
      %s323 = sphi 0, %s325
      %s326 = sphi 0, %s323
      %s327 = sphi 0, %s326
      %s343 = sphi 0, %s327
      %s349 = sphi 0, %s351
      %s352 = sphi 0, %s349
      %s353 = sphi 0, %s352
      %s369 = sphi 0, %s353
      %s375 = sphi 0, %s377
      %s378 = sphi 0, %s375
      %s379 = sphi 0, %s378
      %s395 = sphi 0, %s379
      %s401 = sphi 0, %s403
      %s404 = sphi 0, %s401
      %s405 = sphi 0, %s404
      %s421 = sphi 0, %s405
      %s425 = sphi 0, %s425
      %s427 = sphi 0, %s425
      %s428 = sphi 0, %s427
      %s442 = sphi 0, %s428
      %s448 = sphi 0, %s450
      %s451 = sphi 0, %s448
      %s452 = sphi 0, %s451
      %s468 = sphi 0, %s452
    $region4: #{image_encoder_forward.1} parent=1 // loop_header_branch
      %28 = sbr.rel (%p26) target = $region8
    $region5: #{image_encoder_forward.1} parent=1 // loop_body
      %s30 = ssub.s32 %s25, 1
      %s31 = ssub.s32 %s25, 2
      %s38 = sadd.s32 1, %s33
      %p39 = scmp.ge.s32.totalorder %s38, 2
      %s40 = scalar_select %p39, 0, %s38
      %s41 = sadd.s32 1, %s32
      %s42 = scalar_select %p39, %s41, %s32
      %p43 = scmp.ge.s32.totalorder %s42, 2
      %s44 = scalar_select %p43, 0, %s42
      %s45 = ssub.s32 %s32, %s44
      %p46 = scmp.eq.s32.totalorder %s45, 0
      %s48 = sadd.s32 %s47, 1
      %s49 = scalar_select %p46, %s47, %s48
      %p52 = pneg %p46
      %p53 = scmp.eq.s32.totalorder %s25, 3
      %p54 = por %p52, %p53
      %p55 = scmp.ne.s32.totalorder %s47, %s50
      %p56 = scmp.eq.s32.totalorder %s25, 0
      %p57 = por %p55, %p56
      %p58 = scmp.ne.s32.totalorder %s47, %s50
      %p59 = scmp.eq.s32.totalorder %s30, 3
      %p60 = por %p58, %p59
      %p61 = scmp.ne.s32.totalorder %s50, %s51
      %p62 = scmp.eq.s32.totalorder %s30, 0
      %p63 = por %p61, %p62
      %p64 = scmp.ne.s32.totalorder %s50, %s51
      %p65 = scmp.eq.s32.totalorder %s31, 3
      %p66 = por %p64, %p65
      %p68 = scmp.ne.s32.totalorder %s51, %s67
      %p69 = scmp.eq.s32.totalorder %s31, 0
      %p70 = por %p68, %p69
      %s72 = sadd.s32 %s71, 1
      %p75 = scmp.eq.s32.totalorder %s25, 3
      %p76 = scmp.ne.s32.totalorder %s71, %s73
      %p77 = scmp.eq.s32.totalorder %s25, 0
      %p78 = por %p76, %p77
      %p79 = scmp.ne.s32.totalorder %s71, %s73
      %p80 = scmp.eq.s32.totalorder %s30, 3
      %p81 = por %p79, %p80
      %p82 = scmp.ne.s32.totalorder %s73, %s74
      %p83 = scmp.eq.s32.totalorder %s30, 0
      %p84 = por %p82, %p83
      %p85 = scmp.ne.s32.totalorder %s73, %s74
      %p86 = scmp.eq.s32.totalorder %s31, 3
      %p87 = por %p85, %p86
      %p89 = scmp.ne.s32.totalorder %s74, %s88
      %p90 = scmp.eq.s32.totalorder %s31, 0
      %p91 = por %p89, %p90
      %s93 = sadd.s32 %s92, 1
      %p96 = scmp.eq.s32.totalorder %s25, 3
      %p97 = scmp.ne.s32.totalorder %s92, %s94
      %p98 = scmp.eq.s32.totalorder %s25, 0
      %p99 = por %p97, %p98
      %p100 = scmp.ne.s32.totalorder %s92, %s94
      %p101 = scmp.eq.s32.totalorder %s30, 3
      %p102 = por %p100, %p101
      %p103 = scmp.ne.s32.totalorder %s94, %s95
      %p104 = scmp.eq.s32.totalorder %s30, 0
      %p105 = por %p103, %p104
      %p106 = scmp.ne.s32.totalorder %s94, %s95
      %p107 = scmp.eq.s32.totalorder %s31, 3
      %p108 = por %p106, %p107
      %p110 = scmp.ne.s32.totalorder %s95, %s109
      %p111 = scmp.eq.s32.totalorder %s31, 0
      %p112 = por %p110, %p111
      %s113 = ssub.s32 %s33, %s40
      %p114 = scmp.eq.s32.totalorder %s113, 0
      %s116 = sadd.s32 %s115, 1
      %s117 = scalar_select %p114, %s115, %s116
      %p120 = pneg %p114
      %p121 = scmp.eq.s32.totalorder %s25, 3
      %p122 = por %p120, %p121
      %p123 = scmp.ne.s32.totalorder %s115, %s118
      %p124 = scmp.eq.s32.totalorder %s25, 0
      %p125 = por %p123, %p124
      %p126 = scmp.ne.s32.totalorder %s115, %s118
      %p127 = scmp.eq.s32.totalorder %s30, 3
      %p128 = por %p126, %p127
      %p129 = scmp.ne.s32.totalorder %s118, %s119
      %p130 = scmp.eq.s32.totalorder %s30, 0
      %p131 = por %p129, %p130
      %p132 = scmp.ne.s32.totalorder %s118, %s119
      %p133 = scmp.eq.s32.totalorder %s31, 3
      %p134 = por %p132, %p133
      %p136 = scmp.ne.s32.totalorder %s119, %s135
      %p137 = scmp.eq.s32.totalorder %s31, 0
      %p138 = por %p136, %p137
      %s139 = ssub.s32 %s33, %s40
      %p140 = scmp.eq.s32.totalorder %s139, 0
      %s142 = sadd.s32 %s141, 1
      %s143 = scalar_select %p140, %s141, %s142
      %p146 = pneg %p140
      %p147 = scmp.eq.s32.totalorder %s25, 3
      %p148 = por %p146, %p147
      %p149 = scmp.ne.s32.totalorder %s141, %s144
      %p150 = scmp.eq.s32.totalorder %s25, 0
      %p151 = por %p149, %p150
      %p152 = scmp.ne.s32.totalorder %s141, %s144
      %p153 = scmp.eq.s32.totalorder %s30, 3
      %p154 = por %p152, %p153
      %p155 = scmp.ne.s32.totalorder %s144, %s145
      %p156 = scmp.eq.s32.totalorder %s30, 0
      %p157 = por %p155, %p156
      %p158 = scmp.ne.s32.totalorder %s144, %s145
      %p159 = scmp.eq.s32.totalorder %s31, 3
      %p160 = por %p158, %p159
      %p162 = scmp.ne.s32.totalorder %s145, %s161
      %p163 = scmp.eq.s32.totalorder %s31, 0
      %p164 = por %p162, %p163
      %s165 = ssub.s32 %s33, %s40
      %p166 = scmp.eq.s32.totalorder %s165, 0
      %s168 = sadd.s32 %s167, 1
      %s169 = scalar_select %p166, %s167, %s168
      %p172 = pneg %p166
      %p173 = scmp.eq.s32.totalorder %s25, 3
      %p174 = por %p172, %p173
      %p175 = scmp.ne.s32.totalorder %s167, %s170
      %p176 = scmp.eq.s32.totalorder %s25, 0
      %p177 = por %p175, %p176
      %p178 = scmp.ne.s32.totalorder %s167, %s170
      %p179 = scmp.eq.s32.totalorder %s30, 3
      %p180 = por %p178, %p179
      %p181 = scmp.ne.s32.totalorder %s170, %s171
      %p182 = scmp.eq.s32.totalorder %s30, 0
      %p183 = por %p181, %p182
      %p184 = scmp.ne.s32.totalorder %s170, %s171
      %p185 = scmp.eq.s32.totalorder %s31, 3
      %p186 = por %p184, %p185
      %p188 = scmp.ne.s32.totalorder %s171, %s187
      %p189 = scmp.eq.s32.totalorder %s31, 0
      %p190 = por %p188, %p189
      %s191 = ssub.s32 %s33, %s40
      %p192 = scmp.eq.s32.totalorder %s191, 0
      %s194 = sadd.s32 %s193, 1
      %s195 = scalar_select %p192, %s193, %s194
      %p198 = pneg %p192
      %p199 = scmp.eq.s32.totalorder %s25, 3
      %p200 = por %p198, %p199
      %p201 = scmp.ne.s32.totalorder %s193, %s196
      %p202 = scmp.eq.s32.totalorder %s25, 0
      %p203 = por %p201, %p202
      %p204 = scmp.ne.s32.totalorder %s193, %s196
      %p205 = scmp.eq.s32.totalorder %s30, 3
      %p206 = por %p204, %p205
      %p207 = scmp.ne.s32.totalorder %s196, %s197
      %p208 = scmp.eq.s32.totalorder %s30, 0
      %p209 = por %p207, %p208
      %p210 = scmp.ne.s32.totalorder %s196, %s197
      %p211 = scmp.eq.s32.totalorder %s31, 3
      %p212 = por %p210, %p211
      %p214 = scmp.ne.s32.totalorder %s197, %s213
      %p215 = scmp.eq.s32.totalorder %s31, 0
      %p216 = por %p214, %p215
      %s217 = ssub.s32 %s33, %s40
      %p218 = scmp.eq.s32.totalorder %s217, 0
      %s220 = sadd.s32 %s219, 1
      %s221 = scalar_select %p218, %s219, %s220
      %p224 = pneg %p218
      %p225 = scmp.eq.s32.totalorder %s25, 3
      %p226 = por %p224, %p225
      %p227 = scmp.ne.s32.totalorder %s219, %s222
      %p228 = scmp.eq.s32.totalorder %s25, 0
      %p229 = por %p227, %p228
      %p230 = scmp.ne.s32.totalorder %s219, %s222
      %p231 = scmp.eq.s32.totalorder %s30, 3
      %p232 = por %p230, %p231
      %p233 = scmp.ne.s32.totalorder %s222, %s223
      %p234 = scmp.eq.s32.totalorder %s30, 0
      %p235 = por %p233, %p234
      %p236 = scmp.ne.s32.totalorder %s222, %s223
      %p237 = scmp.eq.s32.totalorder %s31, 3
      %p238 = por %p236, %p237
      %p240 = scmp.ne.s32.totalorder %s223, %s239
      %p241 = scmp.eq.s32.totalorder %s31, 0
      %p242 = por %p240, %p241
      %s243 = ssub.s32 %s33, %s40
      %p244 = scmp.eq.s32.totalorder %s243, 0
      %s246 = sadd.s32 %s245, 1
      %s247 = scalar_select %p244, %s245, %s246
      %p250 = pneg %p244
      %p251 = scmp.eq.s32.totalorder %s25, 3
      %p252 = por %p250, %p251
      %p253 = scmp.ne.s32.totalorder %s245, %s248
      %p254 = scmp.eq.s32.totalorder %s25, 0
      %p255 = por %p253, %p254
      %p256 = scmp.ne.s32.totalorder %s245, %s248
      %p257 = scmp.eq.s32.totalorder %s30, 3
      %p258 = por %p256, %p257
      %p259 = scmp.ne.s32.totalorder %s248, %s249
      %p260 = scmp.eq.s32.totalorder %s30, 0
      %p261 = por %p259, %p260
      %p262 = scmp.ne.s32.totalorder %s248, %s249
      %p263 = scmp.eq.s32.totalorder %s31, 3
      %p264 = por %p262, %p263
      %p266 = scmp.ne.s32.totalorder %s249, %s265
      %p267 = scmp.eq.s32.totalorder %s31, 0
      %p268 = por %p266, %p267
      %s269 = ssub.s32 %s33, %s40
      %p270 = scmp.eq.s32.totalorder %s269, 0
      %s272 = sadd.s32 %s271, 1
      %s273 = scalar_select %p270, %s271, %s272
      %p276 = pneg %p270
      %p277 = scmp.eq.s32.totalorder %s25, 3
      %p278 = por %p276, %p277
      %p279 = scmp.ne.s32.totalorder %s271, %s274
      %p280 = scmp.eq.s32.totalorder %s25, 0
      %p281 = por %p279, %p280
      %p282 = scmp.ne.s32.totalorder %s271, %s274
      %p283 = scmp.eq.s32.totalorder %s30, 3
      %p284 = por %p282, %p283
      %p285 = scmp.ne.s32.totalorder %s274, %s275
      %p286 = scmp.eq.s32.totalorder %s30, 0
      %p287 = por %p285, %p286
      %p288 = scmp.ne.s32.totalorder %s274, %s275
      %p289 = scmp.eq.s32.totalorder %s31, 3
      %p290 = por %p288, %p289
      %p292 = scmp.ne.s32.totalorder %s275, %s291
      %p293 = scmp.eq.s32.totalorder %s31, 0
      %p294 = por %p292, %p293
      %s295 = ssub.s32 %s33, %s40
      %p296 = scmp.eq.s32.totalorder %s295, 0
      %s298 = sadd.s32 %s297, 1
      %s299 = scalar_select %p296, %s297, %s298
      %p302 = pneg %p296
      %p303 = scmp.eq.s32.totalorder %s25, 3
      %p304 = por %p302, %p303
      %p305 = scmp.ne.s32.totalorder %s297, %s300
      %p306 = scmp.eq.s32.totalorder %s25, 0
      %p307 = por %p305, %p306
      %p308 = scmp.ne.s32.totalorder %s297, %s300
      %p309 = scmp.eq.s32.totalorder %s30, 3
      %p310 = por %p308, %p309
      %p311 = scmp.ne.s32.totalorder %s300, %s301
      %p312 = scmp.eq.s32.totalorder %s30, 0
      %p313 = por %p311, %p312
      %p314 = scmp.ne.s32.totalorder %s300, %s301
      %p315 = scmp.eq.s32.totalorder %s31, 3
      %p316 = por %p314, %p315
      %p318 = scmp.ne.s32.totalorder %s301, %s317
      %p319 = scmp.eq.s32.totalorder %s31, 0
      %p320 = por %p318, %p319
      %s321 = ssub.s32 %s33, %s40
      %p322 = scmp.eq.s32.totalorder %s321, 0
      %s324 = sadd.s32 %s323, 1
      %s325 = scalar_select %p322, %s323, %s324
      %p328 = pneg %p322
      %p329 = scmp.eq.s32.totalorder %s25, 3
      %p330 = por %p328, %p329
      %p331 = scmp.ne.s32.totalorder %s323, %s326
      %p332 = scmp.eq.s32.totalorder %s25, 0
      %p333 = por %p331, %p332
      %p334 = scmp.ne.s32.totalorder %s323, %s326
      %p335 = scmp.eq.s32.totalorder %s30, 3
      %p336 = por %p334, %p335
      %p337 = scmp.ne.s32.totalorder %s326, %s327
      %p338 = scmp.eq.s32.totalorder %s30, 0
      %p339 = por %p337, %p338
      %p340 = scmp.ne.s32.totalorder %s326, %s327
      %p341 = scmp.eq.s32.totalorder %s31, 3
      %p342 = por %p340, %p341
      %p344 = scmp.ne.s32.totalorder %s327, %s343
      %p345 = scmp.eq.s32.totalorder %s31, 0
      %p346 = por %p344, %p345
      %s347 = ssub.s32 %s33, %s40
      %p348 = scmp.eq.s32.totalorder %s347, 0
      %s350 = sadd.s32 %s349, 1
      %s351 = scalar_select %p348, %s349, %s350
      %p354 = pneg %p348
      %p355 = scmp.eq.s32.totalorder %s25, 3
      %p356 = por %p354, %p355
      %p357 = scmp.ne.s32.totalorder %s349, %s352
      %p358 = scmp.eq.s32.totalorder %s25, 0
      %p359 = por %p357, %p358
      %p360 = scmp.ne.s32.totalorder %s349, %s352
      %p361 = scmp.eq.s32.totalorder %s30, 3
      %p362 = por %p360, %p361
      %p363 = scmp.ne.s32.totalorder %s352, %s353
      %p364 = scmp.eq.s32.totalorder %s30, 0
      %p365 = por %p363, %p364
      %p366 = scmp.ne.s32.totalorder %s352, %s353
      %p367 = scmp.eq.s32.totalorder %s31, 3
      %p368 = por %p366, %p367
      %p370 = scmp.ne.s32.totalorder %s353, %s369
      %p371 = scmp.eq.s32.totalorder %s31, 0
      %p372 = por %p370, %p371
      %s373 = ssub.s32 %s33, %s40
      %p374 = scmp.eq.s32.totalorder %s373, 0
      %s376 = sadd.s32 %s375, 1
      %s377 = scalar_select %p374, %s375, %s376
      %p380 = pneg %p374
      %p381 = scmp.eq.s32.totalorder %s25, 3
      %p382 = por %p380, %p381
      %p383 = scmp.ne.s32.totalorder %s375, %s378
      %p384 = scmp.eq.s32.totalorder %s25, 0
      %p385 = por %p383, %p384
      %p386 = scmp.ne.s32.totalorder %s375, %s378
      %p387 = scmp.eq.s32.totalorder %s30, 3
      %p388 = por %p386, %p387
      %p389 = scmp.ne.s32.totalorder %s378, %s379
      %p390 = scmp.eq.s32.totalorder %s30, 0
      %p391 = por %p389, %p390
      %p392 = scmp.ne.s32.totalorder %s378, %s379
      %p393 = scmp.eq.s32.totalorder %s31, 3
      %p394 = por %p392, %p393
      %p396 = scmp.ne.s32.totalorder %s379, %s395
      %p397 = scmp.eq.s32.totalorder %s31, 0
      %p398 = por %p396, %p397
      %s399 = ssub.s32 %s33, %s40
      %p400 = scmp.eq.s32.totalorder %s399, 0
      %s402 = sadd.s32 %s401, 1
      %s403 = scalar_select %p400, %s401, %s402
      %p406 = pneg %p400
      %p407 = scmp.eq.s32.totalorder %s25, 3
      %p408 = por %p406, %p407
      %p409 = scmp.ne.s32.totalorder %s401, %s404
      %p410 = scmp.eq.s32.totalorder %s25, 0
      %p411 = por %p409, %p410
      %p412 = scmp.ne.s32.totalorder %s401, %s404
      %p413 = scmp.eq.s32.totalorder %s30, 3
      %p414 = por %p412, %p413
      %p415 = scmp.ne.s32.totalorder %s404, %s405
      %p416 = scmp.eq.s32.totalorder %s30, 0
      %p417 = por %p415, %p416
      %p418 = scmp.ne.s32.totalorder %s404, %s405
      %p419 = scmp.eq.s32.totalorder %s31, 3
      %p420 = por %p418, %p419
      %p422 = scmp.ne.s32.totalorder %s405, %s421
      %p423 = scmp.eq.s32.totalorder %s31, 0
      %p424 = por %p422, %p423
      %s426 = sadd.s32 %s425, 1
      %p429 = scmp.eq.s32.totalorder %s25, 3
      %p430 = scmp.ne.s32.totalorder %s425, %s427
      %p431 = scmp.eq.s32.totalorder %s25, 0
      %p432 = por %p430, %p431
      %p433 = scmp.ne.s32.totalorder %s425, %s427
      %p434 = scmp.eq.s32.totalorder %s30, 3
      %p435 = por %p433, %p434
      %p436 = scmp.ne.s32.totalorder %s427, %s428
      %p437 = scmp.eq.s32.totalorder %s30, 0
      %p438 = por %p436, %p437
      %p439 = scmp.ne.s32.totalorder %s427, %s428
      %p440 = scmp.eq.s32.totalorder %s31, 3
      %p441 = por %p439, %p440
      %p443 = scmp.ne.s32.totalorder %s428, %s442
      %p444 = scmp.eq.s32.totalorder %s31, 0
      %p445 = por %p443, %p444
      %s446 = ssub.s32 %s32, %s44
      %p447 = scmp.eq.s32.totalorder %s446, 0
      %s449 = sadd.s32 %s448, 1
      %s450 = scalar_select %p447, %s448, %s449
      %p453 = pneg %p447
      %p454 = scmp.eq.s32.totalorder %s25, 3
      %p455 = por %p453, %p454
      %p456 = scmp.ne.s32.totalorder %s448, %s451
      %p457 = scmp.eq.s32.totalorder %s25, 0
      %p458 = por %p456, %p457
      %p459 = scmp.ne.s32.totalorder %s448, %s451
      %p460 = scmp.eq.s32.totalorder %s30, 3
      %p461 = por %p459, %p460
      %p462 = scmp.ne.s32.totalorder %s451, %s452
      %p463 = scmp.eq.s32.totalorder %s30, 0
      %p464 = por %p462, %p463
      %p465 = scmp.ne.s32.totalorder %s451, %s452
      %p466 = scmp.eq.s32.totalorder %s31, 3
      %p467 = por %p465, %p466
      %p469 = scmp.ne.s32.totalorder %s452, %s468
      %p470 = scmp.eq.s32.totalorder %s31, 0
      %p471 = por %p469, %p470
      %p472 = scmp.le.s32.totalorder 1, %s25
      %p473 = scmp.lt.s32.totalorder %s25, 5
      %p474 = pnand %p472, %p473
      %p475 = pneg %p474
      // Predicated region
      $region9: #{image_encoder_forward.1} parent=5 // pred_check
        _
      $region10: #{image_encoder_forward.1} parent=5 // pred_check_branch
        %477 = sbr.rel (%p474) target = $region12
      $region11: #{image_encoder_forward.1} parent=5 // pred_region
        %s478 = ssub.s32 %s25, 1
        // Predicated region
        $region13: #{image_encoder_forward.1} parent=11 // pred_check
          %p479 = pneg %p84
        $region14: #{image_encoder_forward.1} parent=11 // pred_check_branch
          %481 = sbr.rel (%p479) target = $region16
        $region15: #{image_encoder_forward.1} parent=11 // pred_region
          _
        $region16: #{image_encoder_forward.1} parent=11 // pred_fallthru
          _
        // Predicated region
        $region17: #{image_encoder_forward.1} parent=11 // pred_check
          %p482 = pneg %p105
        $region18: #{image_encoder_forward.1} parent=11 // pred_check_branch
          %484 = sbr.rel (%p482) target = $region20
        $region19: #{image_encoder_forward.1} parent=11 // pred_region
          _
        $region20: #{image_encoder_forward.1} parent=11 // pred_fallthru
          _
        // Predicated region
        $region21: #{image_encoder_forward.1} parent=11 // pred_check
          %p485 = pneg %p438
        $region22: #{image_encoder_forward.1} parent=11 // pred_check_branch
          %487 = sbr.rel (%p485) target = $region24
        $region23: #{image_encoder_forward.1} parent=11 // pred_region
          _
        $region24: #{image_encoder_forward.1} parent=11 // pred_fallthru
          _
      $region12: #{image_encoder_forward.1} parent=5 // pred_fallthru
        _
      %p488 = scmp.lt.s32.totalorder %s25, 4
      // Predicated region
      $region25: #{image_encoder_forward.1} parent=5 // pred_check
        %p489 = pneg %p488
      $region26: #{image_encoder_forward.1} parent=5 // pred_check_branch
        %491 = sbr.rel (%p489) target = $region28
      $region27: #{image_encoder_forward.1} parent=5 // pred_region
        // Predicated region
        $region29: #{image_encoder_forward.1} parent=27 // pred_check
          %p492 = pneg %p57
        $region30: #{image_encoder_forward.1} parent=27 // pred_check_branch
          %494 = sbr.rel (%p492) target = $region32
        $region31: #{image_encoder_forward.1} parent=27 // pred_region
          %p495 = scmp.lt.s32.totalorder %s32, 1
          %s496 = scalar_select %p495, %s32, 1
          %s497 = smul.addr %s496, 3
          %s498 = smul.addr %s497, 4
          %s499 = scalar_lea.vmem %s0, %s498
        $region32: #{image_encoder_forward.1} parent=27 // pred_fallthru
          _
        // Predicated region
        $region33: #{image_encoder_forward.1} parent=27 // pred_check
          %p500 = pneg %p125
        $region34: #{image_encoder_forward.1} parent=27 // pred_check_branch
          %502 = sbr.rel (%p500) target = $region36
        $region35: #{image_encoder_forward.1} parent=27 // pred_region
          %p503 = scmp.lt.s32.totalorder %s33, 1
          %s504 = scalar_select %p503, %s33, 1
          %s505 = scalar_lea.vmem %s3, %s504
        $region36: #{image_encoder_forward.1} parent=27 // pred_fallthru
          _
        // Predicated region
        $region37: #{image_encoder_forward.1} parent=27 // pred_check
          %p506 = pneg %p151
        $region38: #{image_encoder_forward.1} parent=27 // pred_check_branch
          %508 = sbr.rel (%p506) target = $region40
        $region39: #{image_encoder_forward.1} parent=27 // pred_region
          %p509 = scmp.lt.s32.totalorder %s33, 1
          %s510 = scalar_select %p509, %s33, 1
          %s511 = scalar_lea.vmem %s4, %s510
        $region40: #{image_encoder_forward.1} parent=27 // pred_fallthru
          _
        // Predicated region
        $region41: #{image_encoder_forward.1} parent=27 // pred_check
          %p512 = pneg %p177
        $region42: #{image_encoder_forward.1} parent=27 // pred_check_branch
          %514 = sbr.rel (%p512) target = $region44
        $region43: #{image_encoder_forward.1} parent=27 // pred_region
          %p515 = scmp.lt.s32.totalorder %s33, 1
          %s516 = scalar_select %p515, %s33, 1
          %s517 = smul.addr %s516, 4
          %s518 = smul.addr %s517, 4
          %s519 = scalar_lea.vmem %s5, %s518
        $region44: #{image_encoder_forward.1} parent=27 // pred_fallthru
          _
        // Predicated region
        $region45: #{image_encoder_forward.1} parent=27 // pred_check
          %p520 = pneg %p203
        $region46: #{image_encoder_forward.1} parent=27 // pred_check_branch
          %522 = sbr.rel (%p520) target = $region48
        $region47: #{image_encoder_forward.1} parent=27 // pred_region
          %p523 = scmp.lt.s32.totalorder %s33, 1
          %s524 = scalar_select %p523, %s33, 1
          %s525 = scalar_lea.vmem %s6, %s524
        $region48: #{image_encoder_forward.1} parent=27 // pred_fallthru
          _
        // Predicated region
        $region49: #{image_encoder_forward.1} parent=27 // pred_check
          %p526 = pneg %p229
        $region50: #{image_encoder_forward.1} parent=27 // pred_check_branch
          %528 = sbr.rel (%p526) target = $region52
        $region51: #{image_encoder_forward.1} parent=27 // pred_region
          %p529 = scmp.lt.s32.totalorder %s33, 1
          %s530 = scalar_select %p529, %s33, 1
          %s531 = smul.addr %s530, 4
          %s532 = smul.addr %s531, 4
          %s533 = scalar_lea.vmem %s7, %s532
        $region52: #{image_encoder_forward.1} parent=27 // pred_fallthru
          _
        // Predicated region
        $region53: #{image_encoder_forward.1} parent=27 // pred_check
          %p534 = pneg %p255
        $region54: #{image_encoder_forward.1} parent=27 // pred_check_branch
          %536 = sbr.rel (%p534) target = $region56
        $region55: #{image_encoder_forward.1} parent=27 // pred_region
          %p537 = scmp.lt.s32.totalorder %s33, 1
          %s538 = scalar_select %p537, %s33, 1
          %s539 = scalar_lea.vmem %s8, %s538
        $region56: #{image_encoder_forward.1} parent=27 // pred_fallthru
          _
        // Predicated region
        $region57: #{image_encoder_forward.1} parent=27 // pred_check
          %p540 = pneg %p281
        $region58: #{image_encoder_forward.1} parent=27 // pred_check_branch
          %542 = sbr.rel (%p540) target = $region60
        $region59: #{image_encoder_forward.1} parent=27 // pred_region
          %p543 = scmp.lt.s32.totalorder %s33, 1
          %s544 = scalar_select %p543, %s33, 1
          %s545 = scalar_lea.vmem %s9, %s544
        $region60: #{image_encoder_forward.1} parent=27 // pred_fallthru
          _
        // Predicated region
        $region61: #{image_encoder_forward.1} parent=27 // pred_check
          %p546 = pneg %p307
        $region62: #{image_encoder_forward.1} parent=27 // pred_check_branch
          %548 = sbr.rel (%p546) target = $region64
        $region63: #{image_encoder_forward.1} parent=27 // pred_region
          %p549 = scmp.lt.s32.totalorder %s33, 1
          %s550 = scalar_select %p549, %s33, 1
          %s551 = scalar_lea.vmem %s10, %s550
        $region64: #{image_encoder_forward.1} parent=27 // pred_fallthru
          _
        // Predicated region
        $region65: #{image_encoder_forward.1} parent=27 // pred_check
          %p552 = pneg %p333
        $region66: #{image_encoder_forward.1} parent=27 // pred_check_branch
          %554 = sbr.rel (%p552) target = $region68
        $region67: #{image_encoder_forward.1} parent=27 // pred_region
          %p555 = scmp.lt.s32.totalorder %s33, 1
          %s556 = scalar_select %p555, %s33, 1
          %s557 = smul.addr %s556, 4
          %s558 = smul.addr %s557, 4
          %s559 = scalar_lea.vmem %s11, %s558
        $region68: #{image_encoder_forward.1} parent=27 // pred_fallthru
          _
        // Predicated region
        $region69: #{image_encoder_forward.1} parent=27 // pred_check
          %p560 = pneg %p359
        $region70: #{image_encoder_forward.1} parent=27 // pred_check_branch
          %562 = sbr.rel (%p560) target = $region72
        $region71: #{image_encoder_forward.1} parent=27 // pred_region
          %p563 = scmp.lt.s32.totalorder %s33, 1
          %s564 = scalar_select %p563, %s33, 1
          %s565 = scalar_lea.vmem %s12, %s564
        $region72: #{image_encoder_forward.1} parent=27 // pred_fallthru
          _
        // Predicated region
        $region73: #{image_encoder_forward.1} parent=27 // pred_check
          %p566 = pneg %p385
        $region74: #{image_encoder_forward.1} parent=27 // pred_check_branch
          %568 = sbr.rel (%p566) target = $region76
        $region75: #{image_encoder_forward.1} parent=27 // pred_region
          %p569 = scmp.lt.s32.totalorder %s33, 1
          %s570 = scalar_select %p569, %s33, 1
          %s571 = smul.addr %s570, 16
          %s572 = smul.addr %s571, 4
          %s573 = scalar_lea.vmem %s13, %s572
        $region76: #{image_encoder_forward.1} parent=27 // pred_fallthru
          _
        // Predicated region
        $region77: #{image_encoder_forward.1} parent=27 // pred_check
          %p574 = pneg %p411
        $region78: #{image_encoder_forward.1} parent=27 // pred_check_branch
          %576 = sbr.rel (%p574) target = $region80
        $region79: #{image_encoder_forward.1} parent=27 // pred_region
          %p577 = scmp.lt.s32.totalorder %s33, 1
          %s578 = scalar_select %p577, %s33, 1
          %s579 = scalar_lea.vmem %s14, %s578
        $region80: #{image_encoder_forward.1} parent=27 // pred_fallthru
          _
      $region28: #{image_encoder_forward.1} parent=5 // pred_fallthru
        _
      %p580 = scmp.le.s32.totalorder 1, %s25
      %p581 = scmp.lt.s32.totalorder %s25, 5
      %p582 = pnand %p580, %p581
      %p583 = pneg %p582
      // Predicated region
      $region81: #{image_encoder_forward.1} parent=5 // pred_check
        _
      $region82: #{image_encoder_forward.1} parent=5 // pred_check_branch
        %585 = sbr.rel (%p582) target = $region84
      $region83: #{image_encoder_forward.1} parent=5 // pred_region
        %s586 = ssub.s32 %s25, 1
        %p587 = scmp.lt.s32.totalorder %s34, 1
        %s588 = scalar_select %p587, %s34, 1
        %s589 = smul.addr %s588, 3
        %s590 = smul.addr %s589, 4
        %s591 = scalar_lea.vmem %s0, %s590
        %p592 = pneg %p63
        %p593 = pneg %p60
        %p594 = pneg %p84
        %p595 = pneg %p81
        %p596 = pneg %p105
        %p597 = pneg %p102
        %p598 = scmp.lt.s32.totalorder %s35, 1
        %s599 = scalar_select %p598, %s35, 1
        %s600 = scalar_lea.vmem %s3, %s599
        %p601 = pneg %p131
        %p602 = pneg %p128
        %p603 = scmp.lt.s32.totalorder %s35, 1
        %s604 = scalar_select %p603, %s35, 1
        %s605 = scalar_lea.vmem %s4, %s604
        %p606 = pneg %p157
        %p607 = pneg %p154
        %p608 = scmp.lt.s32.totalorder %s35, 1
        %s609 = scalar_select %p608, %s35, 1
        %s610 = smul.addr %s609, 4
        %s611 = smul.addr %s610, 4
        %s612 = scalar_lea.vmem %s5, %s611
        %p613 = pneg %p183
        %p614 = pneg %p180
        %p615 = scmp.lt.s32.totalorder %s35, 1
        %s616 = scalar_select %p615, %s35, 1
        %s617 = scalar_lea.vmem %s6, %s616
        %p618 = pneg %p209
        %p619 = pneg %p206
        %p620 = scmp.lt.s32.totalorder %s35, 1
        %s621 = scalar_select %p620, %s35, 1
        %s622 = smul.addr %s621, 4
        %s623 = smul.addr %s622, 4
        %s624 = scalar_lea.vmem %s7, %s623
        %p625 = pneg %p235
        %p626 = pneg %p232
        %p627 = scmp.lt.s32.totalorder %s35, 1
        %s628 = scalar_select %p627, %s35, 1
        %s629 = scalar_lea.vmem %s8, %s628
        %p630 = pneg %p261
        %p631 = pneg %p258
        %p632 = scmp.lt.s32.totalorder %s35, 1
        %s633 = scalar_select %p632, %s35, 1
        %s634 = scalar_lea.vmem %s9, %s633
        %p635 = pneg %p287
        %p636 = pneg %p284
        %p637 = scmp.lt.s32.totalorder %s35, 1
        %s638 = scalar_select %p637, %s35, 1
        %s639 = scalar_lea.vmem %s10, %s638
        %p640 = pneg %p313
        %p641 = pneg %p310
        %p642 = scmp.lt.s32.totalorder %s35, 1
        %s643 = scalar_select %p642, %s35, 1
        %s644 = smul.addr %s643, 4
        %s645 = smul.addr %s644, 4
        %s646 = scalar_lea.vmem %s11, %s645
        %p647 = pneg %p339
        %p648 = pneg %p336
        %p649 = scmp.lt.s32.totalorder %s35, 1
        %s650 = scalar_select %p649, %s35, 1
        %s651 = scalar_lea.vmem %s12, %s650
        %p652 = pneg %p365
        %p653 = pneg %p362
        %p654 = scmp.lt.s32.totalorder %s35, 1
        %s655 = scalar_select %p654, %s35, 1
        %s656 = smul.addr %s655, 16
        %s657 = smul.addr %s656, 4
        %s658 = scalar_lea.vmem %s13, %s657
        %p659 = pneg %p391
        %p660 = pneg %p388
        %p661 = scmp.lt.s32.totalorder %s35, 1
        %s662 = scalar_select %p661, %s35, 1
        %s663 = scalar_lea.vmem %s14, %s662
        %p664 = pneg %p417
        %p665 = pneg %p414
        %p666 = pneg %p438
        %p667 = pneg %p435
        %p668 = pneg %p464
        %p669 = pneg %p461
        %s670 = sand.u32 %s451, 1
        %s671 = scalar_lea.sflag [#allocation4], %s670
        %s672 = sand.u32 %s451, 1
        %s673 = scalar_lea.vmem [#allocation3], %s672
        %p674 = scmp.lt.s32.totalorder %s34, 1
        %s675 = scalar_select %p674, %s34, 1
        %s676 = smul.addr %s675, 3
        %s677 = smul.addr %s676, 4
        %s678 = scalar_lea.vmem %s0, %s677
        %p679 = scmp.lt.s32.totalorder %s35, 1
        %s680 = scalar_select %p679, %s35, 1
        %s681 = scalar_lea.vmem %s3, %s680
        %p682 = scmp.lt.s32.totalorder %s35, 1
        %s683 = scalar_select %p682, %s35, 1
        %s684 = scalar_lea.vmem %s4, %s683
        %p685 = scmp.lt.s32.totalorder %s35, 1
        %s686 = scalar_select %p685, %s35, 1
        %s687 = smul.addr %s686, 4
        %s688 = smul.addr %s687, 4
        %s689 = scalar_lea.vmem %s5, %s688
        %p690 = scmp.lt.s32.totalorder %s35, 1
        %s691 = scalar_select %p690, %s35, 1
        %s692 = scalar_lea.vmem %s6, %s691
        %p693 = scmp.lt.s32.totalorder %s35, 1
        %s694 = scalar_select %p693, %s35, 1
        %s695 = smul.addr %s694, 4
        %s696 = smul.addr %s695, 4
        %s697 = scalar_lea.vmem %s7, %s696
        %p698 = scmp.lt.s32.totalorder %s35, 1
        %s699 = scalar_select %p698, %s35, 1
        %s700 = scalar_lea.vmem %s8, %s699
        %p701 = scmp.lt.s32.totalorder %s35, 1
        %s702 = scalar_select %p701, %s35, 1
        %s703 = scalar_lea.vmem %s9, %s702
        %p704 = scmp.lt.s32.totalorder %s35, 1
        %s705 = scalar_select %p704, %s35, 1
        %s706 = scalar_lea.vmem %s10, %s705
        %p707 = scmp.lt.s32.totalorder %s35, 1
        %s708 = scalar_select %p707, %s35, 1
        %s709 = smul.addr %s708, 4
        %s710 = smul.addr %s709, 4
        %s711 = scalar_lea.vmem %s11, %s710
        %p712 = scmp.lt.s32.totalorder %s35, 1
        %s713 = scalar_select %p712, %s35, 1
        %s714 = scalar_lea.vmem %s12, %s713
        %p715 = scmp.lt.s32.totalorder %s35, 1
        %s716 = scalar_select %p715, %s35, 1
        %s717 = smul.addr %s716, 16
        %s718 = smul.addr %s717, 4
        %s719 = scalar_lea.vmem %s13, %s718
        %p720 = scmp.lt.s32.totalorder %s35, 1
        %s721 = scalar_select %p720, %s35, 1
        %s722 = scalar_lea.vmem %s14, %s721
        %p724 = scmp.eq.s32.totalorder %s35, 0
        // Predicated region
        $region85: #{image_encoder_forward.1} parent=83 // pred_check
          %p725 = pneg %p724
        $region86: #{image_encoder_forward.1} parent=83 // pred_check_branch
          %727 = sbr.rel (%p725) target = $region88
        $region87: #{image_encoder_forward.1} parent=83 // pred_region
          %v728 = vld [vmem:[%s678] sm:$0xf]
          %v729 = vld [vmem:[%s678 + $0x4] sm:$0xf]
          %v730 = vld [vmem:[%s678 + $0x8] sm:$0xf]
          %v731 = vld [vmem:[%s1] sm:$0xf]
          %v732 = vld [vmem:[%s1 + $0x4] sm:$0xf]
          %v733 = vld [vmem:[%s1 + $0x8] sm:$0xf]
          %v734 = vld [vmem:[%s1 + $0xc] sm:$0xf]
          %v735 = vld [vmem:[%s1 + $0x10] sm:$0xf]
          %v736 = vld [vmem:[%s1 + $0x14] sm:$0xf]
          %v740 = vunpack.c.l.b16 %v728
          %v741 = vunpack.c.l.b16 %v729
          %v742 = vunpack.c.l.b16 %v730
          %v743 = vpack.c.b16 %v741, %v740
          %v744 = vpack.c.b16 %v742, %v742
          %v751 = vunpack.c.l.b16 %v731
          %v752 = vunpack.c.l.b16 %v732
          %v753 = vunpack.c.l.b16 %v733
          %v754 = vunpack.c.l.b16 %v734
          %v755 = vunpack.c.l.b16 %v735
          %v756 = vunpack.c.l.b16 %v736
          %v757 = vpack.c.b16 %v752, %v751
          %v758 = vpack.c.b16 %v754, %v753
          %v759 = vpack.c.b16 %v756, %v755
          %vm763 = vcmask 392192
          %v765 = vsel %vm763, %v743, 0
          %v768 = vsel %vm763, %v744, 0
          %770 = vmatpush.bf16.msra.mxu0 0
          %771 = vmatpush.bf16.msra.mxu0 0
          %772 = vmatpush.bf16.msra.mxu0 0
          %773 = vmatpush.bf16.msra.mxu0 0
          %774 = vmatpush.bf16.msra.mxu0 0
          %775 = vmatpush.bf16.msra.mxu0 %v759
          %776 = vmatpush.bf16.msra.mxu0 %v758
          %777 = vmatpush.bf16.msra.mxu0 %v757
          %778 = vmatmul.bf16.gmra.mxu0 %v765
          %v779 = vpop.f32.mrf.mxu0
          %v780 = vadd.f32 0.0, %v779
          %v781 = vpop.f32.mrf.mxu0
          %v782 = vadd.f32 0.0, %v781
          %783 = vmatmul.bf16.gmra.mxu0 %v768
          %v784 = vpop.f32.mrf.mxu0
          %v785 = vadd.f32 0.0, %v784
          %v786 = vpop.f32.mrf.mxu0
          %787 = vdwg.mxu0
          %v788 = vld [vmem:[%s2] sm:$0xff]
          %v789 = vld [vmem:[%s2 + $0x8] sm:$0xff]
          %v790 = vld [vmem:[%s2 + $0x10] sm:$0xff]
          %v791 = vadd.f32 %v780, %v788
          %v792 = vadd.f32 %v782, %v789
          %v793 = vadd.f32 %v785, %v790
          %vm794 = vcmask 261120
          %795 = vst.msk [vmem:[#allocation2] sm:$0xff] %vm794, %v791
          %796 = vst.msk [vmem:[#allocation2 + $0x8] sm:$0xff] %vm794, %v792
          %797 = vst.msk [vmem:[#allocation2 + $0x10] sm:$0xff] %vm794, %v793
        $region88: #{image_encoder_forward.1} parent=83 // pred_fallthru
          _
        %v798 = vld [vmem:[#allocation2] sm:$0xff]
        %v799 = vld [vmem:[#allocation2 + $0x8] sm:$0xff]
        %v800 = vld [vmem:[#allocation2 + $0x10] sm:$0xff]
        %v801 = vld [vmem:[%s681] sm:$0x1]
        %v802 = vld [vmem:[%s684] sm:$0x1]
        %vm803 = vcmask 261120
        %v804 = vsel %vm803, %v798, 0.0
        %805 = vadd.xlane.f32.xlu0 %v804
        %v806 = vpop.xlane.xlu0 %805
        %v807 = vsel %vm803, %v799, 0.0
        %808 = vadd.xlane.f32.xlu0 %v807
        %v809 = vpop.xlane.xlu0 %808
        %v810 = vsel %vm803, %v800, 0.0
        %811 = vadd.xlane.f32.xlu0 %v810
        %v812 = vpop.xlane.xlu0 %811
        %v813 = vrcp.pop 32.0
        %v814 = vmul.f32 32.0, %v813
        %v815 = vsub.f32 1.0, %v814
        %v816 = vmul.f32 %v813, %v815
        %v817 = vadd.f32 %v813, %v816
        %vm818 = vweird.f32 %v813
        %v819 = vsel %vm818, %v813, %v817
        %v820 = vmul.f32 %v806, %v819
        %v821 = vmul.f32 %v809, %v819
        %v822 = vmul.f32 %v812, %v819
        %v823 = vsub.f32 %v798, %v820
        %v824 = vsub.f32 %v799, %v821
        %v825 = vsub.f32 %v800, %v822
        %v826 = vmul.f32 %v823, %v823
        %v827 = vmul.f32 %v824, %v824
        %v828 = vmul.f32 %v825, %v825
        %v829 = vsel %vm803, %v826, 0.0
        %830 = vadd.xlane.f32.xlu0 %v829
        %v831 = vpop.xlane.xlu0 %830
        %v832 = vsel %vm803, %v827, 0.0
        %833 = vadd.xlane.f32.xlu0 %v832
        %v834 = vpop.xlane.xlu0 %833
        %v835 = vsel %vm803, %v828, 0.0
        %836 = vadd.xlane.f32.xlu0 %v835
        %v837 = vpop.xlane.xlu0 %836
        %v838 = vmul.f32 %v831, %v819
        %v839 = vmul.f32 %v834, %v819
        %v840 = vmul.f32 %v837, %v819
        %v841 = vadd.f32 %v838, 1e-05
        %v842 = vadd.f32 %v839, 1e-05
        %v843 = vadd.f32 %v840, 1e-05
        %v844 = vrsqrt.pop %v841
        %v845 = vmul.f32 %v844, %v841
        %v846 = vmul.f32 %v845, %v844
        %v847 = vmul.f32 0.5, %v846
        %v848 = vsub.f32 1.5, %v847
        %v849 = vmul.f32 %v844, %v848
        %vm850 = vweird.f32 %v841
        %vm851 = vweird.f32 %v844
        %vm852 = vmor %vm850, %vm851
        %v853 = vsel %vm852, %v844, %v849
        %v854 = vrsqrt.pop %v842
        %v855 = vmul.f32 %v854, %v842
        %v856 = vmul.f32 %v855, %v854
        %v857 = vmul.f32 0.5, %v856
        %v858 = vsub.f32 1.5, %v857
        %v859 = vmul.f32 %v854, %v858
        %vm860 = vweird.f32 %v842
        %vm861 = vweird.f32 %v854
        %vm862 = vmor %vm860, %vm861
        %v863 = vsel %vm862, %v854, %v859
        %v864 = vrsqrt.pop %v843
        %v865 = vmul.f32 %v864, %v843
        %v866 = vmul.f32 %v865, %v864
        %v867 = vmul.f32 0.5, %v866
        %v868 = vsub.f32 1.5, %v867
        %v869 = vmul.f32 %v864, %v868
        %vm870 = vweird.f32 %v843
        %vm871 = vweird.f32 %v864
        %vm872 = vmor %vm870, %vm871
        %v873 = vsel %vm872, %v864, %v869
        %v874 = vmul.f32 %v823, %v853
        %v875 = vmul.f32 %v824, %v863
        %v876 = vmul.f32 %v825, %v873
        %v878 = vperm.slane %v801, 0
        %v880 = vmul.f32 %v874, %v878
        %v881 = vmul.f32 %v875, %v878
        %v882 = vmul.f32 %v876, %v878
        %v884 = vperm.slane %v802, 0
        %v886 = vadd.f32 %v880, %v884
        %v887 = vadd.f32 %v881, %v884
        %v888 = vadd.f32 %v882, %v884
        %v889 = vpack.c.bf16 %v887, %v886
        %v890 = vpack.c.bf16 %v888, %v888
        %v891 = vld [vmem:[%s689] sm:$0xf]
        %v892 = vld [vmem:[%s689 + $0x4] sm:$0xf]
        %v893 = vld [vmem:[%s689 + $0x8] sm:$0xf]
        %v894 = vld [vmem:[%s689 + $0xc] sm:$0xf]
        %v895 = vld [vmem:[%s692] sm:$0x1]
        %v897 = vperm.slane %v895, 0
        %v903 = vunpack.c.l.b16 %v891
        %v904 = vunpack.c.l.b16 %v892
        %v905 = vunpack.c.l.b16 %v893
        %v906 = vunpack.c.l.b16 %v894
        %v907 = vpack.c.b16 %v904, %v903
        %v908 = vpack.c.b16 %v906, %v905
        %v912 = vsel %vm803, %v889, 0
        %v915 = vsel %vm803, %v890, 0
        %917 = vmatpush.bf16.msra.mxu0 0
        %918 = vmatpush.bf16.msra.mxu0 0
        %919 = vmatpush.bf16.msra.mxu0 0
        %920 = vmatpush.bf16.msra.mxu0 0
        %921 = vmatpush.bf16.msra.mxu0 0
        %922 = vmatpush.bf16.msra.mxu0 0
        %923 = vmatpush.bf16.msra.mxu0 %v908
        %924 = vmatpush.bf16.msra.mxu0 %v907
        %925 = vmatmul.bf16.gmra.mxu0 %v912
        %v926 = vpop.f32.mrf.mxu0
        %v927 = vadd.f32 %v897, %v926
        %v928 = vpop.f32.mrf.mxu0
        %v929 = vadd.f32 %v897, %v928
        %930 = vmatmul.bf16.gmra.mxu0 %v915
        %v931 = vpop.f32.mrf.mxu0
        %v932 = vadd.f32 %v897, %v931
        %v933 = vpop.f32.mrf.mxu0
        %934 = vdwg.mxu0
        %938 = vrot.lane.b32.xlu0 %v927, 104
        %v939 = vpop.permute.xlu0 %938
        %940 = vrot.lane.b32.xlu0 %v929, 104
        %v941 = vpop.permute.xlu0 %940
        %942 = vrot.lane.b32.xlu0 %v932, 104
        %v943 = vpop.permute.xlu0 %942
        %947 = vrot.lane.b32.xlu0 %v927, 80
        %v948 = vpop.permute.xlu0 %947
        %949 = vrot.lane.b32.xlu0 %v929, 80
        %v950 = vpop.permute.xlu0 %949
        %951 = vrot.lane.b32.xlu0 %v932, 80
        %v952 = vpop.permute.xlu0 %951
        %956 = vrot.lane.b32.xlu0 %v927, 56
        %v957 = vpop.permute.xlu0 %956
        %958 = vrot.lane.b32.xlu0 %v929, 56
        %v959 = vpop.permute.xlu0 %958
        %960 = vrot.lane.b32.xlu0 %v932, 56
        %v961 = vpop.permute.xlu0 %960
        %v965 = vpack.c.bf16 %v927, %v927
        %v966 = vpack.c.bf16 %v929, %v929
        %v967 = vpack.c.bf16 %v932, %v932
        %v968 = vpack.c.bf16 %v939, %v939
        %v969 = vpack.c.bf16 %v941, %v941
        %v970 = vpack.c.bf16 %v943, %v943
        %v971 = vpack.c.bf16 %v948, %v948
        %v972 = vpack.c.bf16 %v950, %v950
        %v973 = vpack.c.bf16 %v952, %v952
        %v974 = vpack.c.bf16 %v957, %v957
        %v975 = vpack.c.bf16 %v959, %v959
        %v976 = vpack.c.bf16 %v961, %v961
        %v980 = vunpack.c.l.b16 %v965
        %v981 = vunpack.c.l.b16 %v966
        %v982 = vunpack.c.l.b16 %v967
        %v983 = vpack.c.b16 %v981, %v980
        %v984 = vpack.c.b16 %v982, %v982
        %985 = vrot.lane.b32.xlu0 %v983, 120
        %v986 = vpop.permute.xlu0 %985
        %987 = vrot.lane.b32.xlu0 %v984, 120
        %v988 = vpop.permute.xlu0 %987
        %vm989 = vcmask 64512
        %v991 = vsel %vm989, %v983, 0
        %v994 = vsel %vm989, %v984, 0
        %v997 = vsel %vm989, %v986, 0
        %v1000 = vsel %vm989, %v988, 0
        %1002 = vmatpush.bf16.xpose.msra.mxu0 0
        %1003 = vmatpush.bf16.xpose.msra.mxu0 0
        %1004 = vmatpush.bf16.xpose.msra.mxu0 0
        %1005 = vmatpush.bf16.xpose.msra.mxu0 0
        %1006 = vmatpush.bf16.xpose.msra.mxu0 0
        %1007 = vmatpush.bf16.xpose.msra.mxu0 0
        %1008 = vmatpush.bf16.xpose.msra.mxu0 %v1000
        %1009 = vmatpush.bf16.xpose.msra.mxu0 %v997
        %1010 = vmatmul.bf16.gmra.mxu0 %v991
        %v1011 = vpop.f32.mrf.mxu0
        %v1012 = vadd.f32 0.0, %v1011
        %v1013 = vpop.f32.mrf.mxu0
        %v1014 = vadd.f32 0.0, %v1013
        %1015 = vmatmul.bf16.gmra.mxu0 %v994
        %v1016 = vpop.f32.mrf.mxu0
        %v1017 = vadd.f32 0.0, %v1016
        %v1018 = vpop.f32.mrf.mxu0
        %1019 = vdwg.mxu0
        %v1023 = vunpack.c.l.b16 %v968
        %v1024 = vunpack.c.l.b16 %v969
        %v1025 = vunpack.c.l.b16 %v970
        %v1026 = vpack.c.b16 %v1024, %v1023
        %v1027 = vpack.c.b16 %v1025, %v1025
        %1028 = vrot.lane.b32.xlu0 %v1026, 120
        %v1029 = vpop.permute.xlu0 %1028
        %1030 = vrot.lane.b32.xlu0 %v1027, 120
        %v1031 = vpop.permute.xlu0 %1030
        %v1033 = vsel %vm989, %v1026, 0
        %v1036 = vsel %vm989, %v1027, 0
        %v1039 = vsel %vm989, %v1029, 0
        %v1042 = vsel %vm989, %v1031, 0
        %1044 = vmatpush.bf16.xpose.msra.mxu0 0
        %1045 = vmatpush.bf16.xpose.msra.mxu0 0
        %1046 = vmatpush.bf16.xpose.msra.mxu0 0
        %1047 = vmatpush.bf16.xpose.msra.mxu0 0
        %1048 = vmatpush.bf16.xpose.msra.mxu0 0
        %1049 = vmatpush.bf16.xpose.msra.mxu0 0
        %1050 = vmatpush.bf16.xpose.msra.mxu0 %v1042
        %1051 = vmatpush.bf16.xpose.msra.mxu0 %v1039
        %1052 = vmatmul.bf16.gmra.mxu0 %v1033
        %v1053 = vpop.f32.mrf.mxu0
        %v1054 = vadd.f32 0.0, %v1053
        %v1055 = vpop.f32.mrf.mxu0
        %v1056 = vadd.f32 0.0, %v1055
        %1057 = vmatmul.bf16.gmra.mxu0 %v1036
        %v1058 = vpop.f32.mrf.mxu0
        %v1059 = vadd.f32 0.0, %v1058
        %v1060 = vpop.f32.mrf.mxu0
        %1061 = vdwg.mxu0
        %v1065 = vunpack.c.l.b16 %v971
        %v1066 = vunpack.c.l.b16 %v972
        %v1067 = vunpack.c.l.b16 %v973
        %v1068 = vpack.c.b16 %v1066, %v1065
        %v1069 = vpack.c.b16 %v1067, %v1067
        %1070 = vrot.lane.b32.xlu0 %v1068, 120
        %v1071 = vpop.permute.xlu0 %1070
        %1072 = vrot.lane.b32.xlu0 %v1069, 120
        %v1073 = vpop.permute.xlu0 %1072
        %v1075 = vsel %vm989, %v1068, 0
        %v1078 = vsel %vm989, %v1069, 0
        %v1081 = vsel %vm989, %v1071, 0
        %v1084 = vsel %vm989, %v1073, 0
        %1086 = vmatpush.bf16.xpose.msra.mxu0 0
        %1087 = vmatpush.bf16.xpose.msra.mxu0 0
        %1088 = vmatpush.bf16.xpose.msra.mxu0 0
        %1089 = vmatpush.bf16.xpose.msra.mxu0 0
        %1090 = vmatpush.bf16.xpose.msra.mxu0 0
        %1091 = vmatpush.bf16.xpose.msra.mxu0 0
        %1092 = vmatpush.bf16.xpose.msra.mxu0 %v1084
        %1093 = vmatpush.bf16.xpose.msra.mxu0 %v1081
        %1094 = vmatmul.bf16.gmra.mxu0 %v1075
        %v1095 = vpop.f32.mrf.mxu0
        %v1096 = vadd.f32 0.0, %v1095
        %v1097 = vpop.f32.mrf.mxu0
        %v1098 = vadd.f32 0.0, %v1097
        %1099 = vmatmul.bf16.gmra.mxu0 %v1078
        %v1100 = vpop.f32.mrf.mxu0
        %v1101 = vadd.f32 0.0, %v1100
        %v1102 = vpop.f32.mrf.mxu0
        %1103 = vdwg.mxu0
        %v1107 = vunpack.c.l.b16 %v974
        %v1108 = vunpack.c.l.b16 %v975
        %v1109 = vunpack.c.l.b16 %v976
        %v1110 = vpack.c.b16 %v1108, %v1107
        %v1111 = vpack.c.b16 %v1109, %v1109
        %1112 = vrot.lane.b32.xlu0 %v1110, 120
        %v1113 = vpop.permute.xlu0 %1112
        %1114 = vrot.lane.b32.xlu0 %v1111, 120
        %v1115 = vpop.permute.xlu0 %1114
        %v1117 = vsel %vm989, %v1110, 0
        %v1120 = vsel %vm989, %v1111, 0
        %v1123 = vsel %vm989, %v1113, 0
        %v1126 = vsel %vm989, %v1115, 0
        %1128 = vmatpush.bf16.xpose.msra.mxu0 0
        %1129 = vmatpush.bf16.xpose.msra.mxu0 0
        %1130 = vmatpush.bf16.xpose.msra.mxu0 0
        %1131 = vmatpush.bf16.xpose.msra.mxu0 0
        %1132 = vmatpush.bf16.xpose.msra.mxu0 0
        %1133 = vmatpush.bf16.xpose.msra.mxu0 0
        %1134 = vmatpush.bf16.xpose.msra.mxu0 %v1126
        %1135 = vmatpush.bf16.xpose.msra.mxu0 %v1123
        %1136 = vmatmul.bf16.gmra.mxu0 %v1117
        %v1137 = vpop.f32.mrf.mxu0
        %v1138 = vadd.f32 0.0, %v1137
        %v1139 = vpop.f32.mrf.mxu0
        %v1140 = vadd.f32 0.0, %v1139
        %1141 = vmatmul.bf16.gmra.mxu0 %v1120
        %v1142 = vpop.f32.mrf.mxu0
        %v1143 = vadd.f32 0.0, %v1142
        %v1144 = vpop.f32.mrf.mxu0
        %1145 = vdwg.mxu0
        %v1146 = vmul.f32 %v1012, 0.35355338
        %v1147 = vmul.f32 %v1014, 0.35355338
        %v1148 = vmul.f32 %v1017, 0.35355338
        %v1149 = vmul.f32 %v1054, 0.35355338
        %v1150 = vmul.f32 %v1056, 0.35355338
        %v1151 = vmul.f32 %v1059, 0.35355338
        %v1152 = vmul.f32 %v1096, 0.35355338
        %v1153 = vmul.f32 %v1098, 0.35355338
        %v1154 = vmul.f32 %v1101, 0.35355338
        %v1155 = vmul.f32 %v1138, 0.35355338
        %v1156 = vmul.f32 %v1140, 0.35355338
        %v1157 = vmul.f32 %v1143, 0.35355338
        %v1158 = vlaneseq
        %v1159 = vand.u32 %v1158, 127
        %vm1160 = vcmp.lt.s32.totalorder %v1159, 17
        %v1161 = vsel %vm1160, 1, 0
        %vm1162 = vcmp.eq.s32.totalorder %v1161, 1
        %v1163 = vsel %vm1162, %v1146, -1e+30
        %v1164 = vsel %vm1162, %v1147, -1e+30
        %v1165 = vsel %vm1162, %v1148, -1e+30
        %v1166 = vsel %vm1162, %v1149, -1e+30
        %v1167 = vsel %vm1162, %v1150, -1e+30
        %v1168 = vsel %vm1162, %v1151, -1e+30
        %v1169 = vsel %vm1162, %v1152, -1e+30
        %v1170 = vsel %vm1162, %v1153, -1e+30
        %v1171 = vsel %vm1162, %v1154, -1e+30
        %v1172 = vsel %vm1162, %v1155, -1e+30
        %v1173 = vsel %vm1162, %v1156, -1e+30
        %v1174 = vsel %vm1162, %v1157, -1e+30
        %vm1175 = vcmask 195584
        %v1176 = vsel %vm1175, %v1163, -inf
        %1177 = vmax.xlane.f32.xlu0 %v1176
        %v1178 = vpop.xlane.xlu0 %1177
        %v1179 = vsel %vm1175, %v1164, -inf
        %1180 = vmax.xlane.f32.xlu0 %v1179
        %v1181 = vpop.xlane.xlu0 %1180
        %v1182 = vsel %vm1175, %v1165, -inf
        %1183 = vmax.xlane.f32.xlu0 %v1182
        %v1184 = vpop.xlane.xlu0 %1183
        %v1185 = vsel %vm1175, %v1166, -inf
        %1186 = vmax.xlane.f32.xlu0 %v1185
        %v1187 = vpop.xlane.xlu0 %1186
        %v1188 = vsel %vm1175, %v1167, -inf
        %1189 = vmax.xlane.f32.xlu0 %v1188
        %v1190 = vpop.xlane.xlu0 %1189
        %v1191 = vsel %vm1175, %v1168, -inf
        %1192 = vmax.xlane.f32.xlu0 %v1191
        %v1193 = vpop.xlane.xlu0 %1192
        %v1194 = vsel %vm1175, %v1169, -inf
        %1195 = vmax.xlane.f32.xlu0 %v1194
        %v1196 = vpop.xlane.xlu0 %1195
        %v1197 = vsel %vm1175, %v1170, -inf
        %1198 = vmax.xlane.f32.xlu0 %v1197
        %v1199 = vpop.xlane.xlu0 %1198
        %v1200 = vsel %vm1175, %v1171, -inf
        %1201 = vmax.xlane.f32.xlu0 %v1200
        %v1202 = vpop.xlane.xlu0 %1201
        %v1203 = vsel %vm1175, %v1172, -inf
        %1204 = vmax.xlane.f32.xlu0 %v1203
        %v1205 = vpop.xlane.xlu0 %1204
        %v1206 = vsel %vm1175, %v1173, -inf
        %1207 = vmax.xlane.f32.xlu0 %v1206
        %v1208 = vpop.xlane.xlu0 %1207
        %v1209 = vsel %vm1175, %v1174, -inf
        %1210 = vmax.xlane.f32.xlu0 %v1209
        %v1211 = vpop.xlane.xlu0 %1210
        %v1212 = vsub.f32 %v1163, %v1178
        %v1213 = vsub.f32 %v1164, %v1181
        %v1214 = vsub.f32 %v1165, %v1184
        %v1215 = vsub.f32 %v1166, %v1187
        %v1216 = vsub.f32 %v1167, %v1190
        %v1217 = vsub.f32 %v1168, %v1193
        %v1218 = vsub.f32 %v1169, %v1196
        %v1219 = vsub.f32 %v1170, %v1199
        %v1220 = vsub.f32 %v1171, %v1202
        %v1221 = vsub.f32 %v1172, %v1205
        %v1222 = vsub.f32 %v1173, %v1208
        %v1223 = vsub.f32 %v1174, %v1211
        %v1224 = vmul.f32 %v1212, 1.442695
        %v1225 = vpow.pop %v1224
        %v1226 = vmul.f32 %v1213, 1.442695
        %v1227 = vpow.pop %v1226
        %v1228 = vmul.f32 %v1214, 1.442695
        %v1229 = vpow.pop %v1228
        %v1230 = vmul.f32 %v1215, 1.442695
        %v1231 = vpow.pop %v1230
        %v1232 = vmul.f32 %v1216, 1.442695
        %v1233 = vpow.pop %v1232
        %v1234 = vmul.f32 %v1217, 1.442695
        %v1235 = vpow.pop %v1234
        %v1236 = vmul.f32 %v1218, 1.442695
        %v1237 = vpow.pop %v1236
        %v1238 = vmul.f32 %v1219, 1.442695
        %v1239 = vpow.pop %v1238
        %v1240 = vmul.f32 %v1220, 1.442695
        %v1241 = vpow.pop %v1240
        %v1242 = vmul.f32 %v1221, 1.442695
        %v1243 = vpow.pop %v1242
        %v1244 = vmul.f32 %v1222, 1.442695
        %v1245 = vpow.pop %v1244
        %v1246 = vmul.f32 %v1223, 1.442695
        %v1247 = vpow.pop %v1246
        %v1248 = vsel %vm1175, %v1225, 0.0
        %1249 = vadd.xlane.f32.xlu0 %v1248
        %v1250 = vpop.xlane.xlu0 %1249
        %v1251 = vsel %vm1175, %v1227, 0.0
        %1252 = vadd.xlane.f32.xlu0 %v1251
        %v1253 = vpop.xlane.xlu0 %1252
        %v1254 = vsel %vm1175, %v1229, 0.0
        %1255 = vadd.xlane.f32.xlu0 %v1254
        %v1256 = vpop.xlane.xlu0 %1255
        %v1257 = vsel %vm1175, %v1231, 0.0
        %1258 = vadd.xlane.f32.xlu0 %v1257
        %v1259 = vpop.xlane.xlu0 %1258
        %v1260 = vsel %vm1175, %v1233, 0.0
        %1261 = vadd.xlane.f32.xlu0 %v1260
        %v1262 = vpop.xlane.xlu0 %1261
        %v1263 = vsel %vm1175, %v1235, 0.0
        %1264 = vadd.xlane.f32.xlu0 %v1263
        %v1265 = vpop.xlane.xlu0 %1264
        %v1266 = vsel %vm1175, %v1237, 0.0
        %1267 = vadd.xlane.f32.xlu0 %v1266
        %v1268 = vpop.xlane.xlu0 %1267
        %v1269 = vsel %vm1175, %v1239, 0.0
        %1270 = vadd.xlane.f32.xlu0 %v1269
        %v1271 = vpop.xlane.xlu0 %1270
        %v1272 = vsel %vm1175, %v1241, 0.0
        %1273 = vadd.xlane.f32.xlu0 %v1272
        %v1274 = vpop.xlane.xlu0 %1273
        %v1275 = vsel %vm1175, %v1243, 0.0
        %1276 = vadd.xlane.f32.xlu0 %v1275
        %v1277 = vpop.xlane.xlu0 %1276
        %v1278 = vsel %vm1175, %v1245, 0.0
        %1279 = vadd.xlane.f32.xlu0 %v1278
        %v1280 = vpop.xlane.xlu0 %1279
        %v1281 = vsel %vm1175, %v1247, 0.0
        %1282 = vadd.xlane.f32.xlu0 %v1281
        %v1283 = vpop.xlane.xlu0 %1282
        %v1284 = vrcp.pop %v1250
        %v1285 = vrcp.pop %v1253
        %v1286 = vrcp.pop %v1256
        %v1287 = vrcp.pop %v1259
        %v1288 = vrcp.pop %v1262
        %v1289 = vrcp.pop %v1265
        %v1290 = vrcp.pop %v1268
        %v1291 = vrcp.pop %v1271
        %v1292 = vrcp.pop %v1274
        %v1293 = vrcp.pop %v1277
        %v1294 = vrcp.pop %v1280
        %v1295 = vrcp.pop %v1283
        %v1296 = vmul.f32 %v1225, %v1284
        %v1297 = vmul.f32 %v1227, %v1285
        %v1298 = vmul.f32 %v1229, %v1286
        %v1299 = vmul.f32 %v1231, %v1287
        %v1300 = vmul.f32 %v1233, %v1288
        %v1301 = vmul.f32 %v1235, %v1289
        %v1302 = vmul.f32 %v1237, %v1290
        %v1303 = vmul.f32 %v1239, %v1291
        %v1304 = vmul.f32 %v1241, %v1292
        %v1305 = vmul.f32 %v1243, %v1293
        %v1306 = vmul.f32 %v1245, %v1294
        %v1307 = vmul.f32 %v1247, %v1295
        %v1308 = vpack.c.bf16 %v1296, %v1296
        %v1309 = vpack.c.bf16 %v1297, %v1297
        %v1310 = vpack.c.bf16 %v1298, %v1298
        %v1311 = vpack.c.bf16 %v1299, %v1299
        %v1312 = vpack.c.bf16 %v1300, %v1300
        %v1313 = vpack.c.bf16 %v1301, %v1301
        %v1314 = vpack.c.bf16 %v1302, %v1302
        %v1315 = vpack.c.bf16 %v1303, %v1303
        %v1316 = vpack.c.bf16 %v1304, %v1304
        %v1317 = vpack.c.bf16 %v1305, %v1305
        %v1318 = vpack.c.bf16 %v1306, %v1306
        %v1319 = vpack.c.bf16 %v1307, %v1307
        %v1323 = vunpack.c.l.b16 %v1308
        %v1324 = vunpack.c.l.b16 %v1309
        %v1325 = vunpack.c.l.b16 %v1310
        %v1326 = vpack.c.b16 %v1324, %v1323
        %v1327 = vpack.c.b16 %v1325, %v1325
        %1328 = vrot.lane.b32.xlu0 %v983, 112
        %v1329 = vpop.permute.xlu0 %1328
        %1330 = vrot.lane.b32.xlu0 %v984, 112
        %v1331 = vpop.permute.xlu0 %1330
        %v1334 = vsel %vm1175, %v1326, 0
        %v1337 = vsel %vm1175, %v1327, 0
        %vm1339 = vcmask 1043456
        %v1341 = vsel %vm1339, %v1331, 0
        %1343 = vmatpush.bf16.msra.mxu0 0
        %1344 = vmatpush.bf16.msra.mxu0 0
        %1345 = vmatpush.bf16.msra.mxu0 0
        %1346 = vmatpush.bf16.msra.mxu0 0
        %1347 = vmatpush.bf16.msra.mxu0 0
        %1348 = vmatpush.bf16.msra.mxu0 0
        %1349 = vmatpush.bf16.msra.mxu0 %v1341
        %1350 = vmatpush.bf16.msra.mxu0 %v1329
        %1351 = vmatmul.bf16.gmra.mxu0 %v1334
        %v1352 = vpop.f32.mrf.mxu0
        %v1353 = vadd.f32 0.0, %v1352
        %v1354 = vpop.f32.mrf.mxu0
        %v1355 = vadd.f32 0.0, %v1354
        %1356 = vmatmul.bf16.gmra.mxu0 %v1337
        %v1357 = vpop.f32.mrf.mxu0
        %v1358 = vadd.f32 0.0, %v1357
        %v1359 = vpop.f32.mrf.mxu0
        %1360 = vdwg.mxu0
        %v1364 = vunpack.c.l.b16 %v1311
        %v1365 = vunpack.c.l.b16 %v1312
        %v1366 = vunpack.c.l.b16 %v1313
        %v1367 = vpack.c.b16 %v1365, %v1364
        %v1368 = vpack.c.b16 %v1366, %v1366
        %1369 = vrot.lane.b32.xlu0 %v1026, 112
        %v1370 = vpop.permute.xlu0 %1369
        %1371 = vrot.lane.b32.xlu0 %v1027, 112
        %v1372 = vpop.permute.xlu0 %1371
        %v1375 = vsel %vm1175, %v1367, 0
        %v1378 = vsel %vm1175, %v1368, 0
        %v1381 = vsel %vm1339, %v1372, 0
        %1383 = vmatpush.bf16.msra.mxu0 0
        %1384 = vmatpush.bf16.msra.mxu0 0
        %1385 = vmatpush.bf16.msra.mxu0 0
        %1386 = vmatpush.bf16.msra.mxu0 0
        %1387 = vmatpush.bf16.msra.mxu0 0
        %1388 = vmatpush.bf16.msra.mxu0 0
        %1389 = vmatpush.bf16.msra.mxu0 %v1381
        %1390 = vmatpush.bf16.msra.mxu0 %v1370
        %1391 = vmatmul.bf16.gmra.mxu0 %v1375
        %v1392 = vpop.f32.mrf.mxu0
        %v1393 = vadd.f32 0.0, %v1392
        %v1394 = vpop.f32.mrf.mxu0
        %v1395 = vadd.f32 0.0, %v1394
        %1396 = vmatmul.bf16.gmra.mxu0 %v1378
        %v1397 = vpop.f32.mrf.mxu0
        %v1398 = vadd.f32 0.0, %v1397
        %v1399 = vpop.f32.mrf.mxu0
        %1400 = vdwg.mxu0
        %v1404 = vunpack.c.l.b16 %v1314
        %v1405 = vunpack.c.l.b16 %v1315
        %v1406 = vunpack.c.l.b16 %v1316
        %v1407 = vpack.c.b16 %v1405, %v1404
        %v1408 = vpack.c.b16 %v1406, %v1406
        %1409 = vrot.lane.b32.xlu0 %v1068, 112
        %v1410 = vpop.permute.xlu0 %1409
        %1411 = vrot.lane.b32.xlu0 %v1069, 112
        %v1412 = vpop.permute.xlu0 %1411
        %v1415 = vsel %vm1175, %v1407, 0
        %v1418 = vsel %vm1175, %v1408, 0
        %v1421 = vsel %vm1339, %v1412, 0
        %1423 = vmatpush.bf16.msra.mxu0 0
        %1424 = vmatpush.bf16.msra.mxu0 0
        %1425 = vmatpush.bf16.msra.mxu0 0
        %1426 = vmatpush.bf16.msra.mxu0 0
        %1427 = vmatpush.bf16.msra.mxu0 0
        %1428 = vmatpush.bf16.msra.mxu0 0
        %1429 = vmatpush.bf16.msra.mxu0 %v1421
        %1430 = vmatpush.bf16.msra.mxu0 %v1410
        %1431 = vmatmul.bf16.gmra.mxu0 %v1415
        %v1432 = vpop.f32.mrf.mxu0
        %v1433 = vadd.f32 0.0, %v1432
        %v1434 = vpop.f32.mrf.mxu0
        %v1435 = vadd.f32 0.0, %v1434
        %1436 = vmatmul.bf16.gmra.mxu0 %v1418
        %v1437 = vpop.f32.mrf.mxu0
        %v1438 = vadd.f32 0.0, %v1437
        %v1439 = vpop.f32.mrf.mxu0
        %1440 = vdwg.mxu0
        %v1444 = vunpack.c.l.b16 %v1317
        %v1445 = vunpack.c.l.b16 %v1318
        %v1446 = vunpack.c.l.b16 %v1319
        %v1447 = vpack.c.b16 %v1445, %v1444
        %v1448 = vpack.c.b16 %v1446, %v1446
        %1449 = vrot.lane.b32.xlu0 %v1110, 112
        %v1450 = vpop.permute.xlu0 %1449
        %1451 = vrot.lane.b32.xlu0 %v1111, 112
        %v1452 = vpop.permute.xlu0 %1451
        %v1455 = vsel %vm1175, %v1447, 0
        %v1458 = vsel %vm1175, %v1448, 0
        %v1461 = vsel %vm1339, %v1452, 0
        %1463 = vmatpush.bf16.msra.mxu0 0
        %1464 = vmatpush.bf16.msra.mxu0 0
        %1465 = vmatpush.bf16.msra.mxu0 0
        %1466 = vmatpush.bf16.msra.mxu0 0
        %1467 = vmatpush.bf16.msra.mxu0 0
        %1468 = vmatpush.bf16.msra.mxu0 0
        %1469 = vmatpush.bf16.msra.mxu0 %v1461
        %1470 = vmatpush.bf16.msra.mxu0 %v1450
        %1471 = vmatmul.bf16.gmra.mxu0 %v1455
        %v1472 = vpop.f32.mrf.mxu0
        %v1473 = vadd.f32 0.0, %v1472
        %v1474 = vpop.f32.mrf.mxu0
        %v1475 = vadd.f32 0.0, %v1474
        %1476 = vmatmul.bf16.gmra.mxu0 %v1458
        %v1477 = vpop.f32.mrf.mxu0
        %v1478 = vadd.f32 0.0, %v1477
        %v1479 = vpop.f32.mrf.mxu0
        %1480 = vdwg.mxu0
        %1484 = vrot.lane.b32.xlu0 %v1393, 8
        %v1485 = vpop.permute.xlu0 %1484
        %1486 = vrot.lane.b32.xlu0 %v1395, 8
        %v1487 = vpop.permute.xlu0 %1486
        %1488 = vrot.lane.b32.xlu0 %v1398, 8
        %v1489 = vpop.permute.xlu0 %1488
        %1496 = vrot.lane.b32.xlu0 %v1433, 16
        %v1497 = vpop.permute.xlu0 %1496
        %1498 = vrot.lane.b32.xlu0 %v1435, 16
        %v1499 = vpop.permute.xlu0 %1498
        %1500 = vrot.lane.b32.xlu0 %v1438, 16
        %v1501 = vpop.permute.xlu0 %1500
        %1508 = vrot.lane.b32.xlu0 %v1473, 24
        %v1509 = vpop.permute.xlu0 %1508
        %1510 = vrot.lane.b32.xlu0 %v1475, 24
        %v1511 = vpop.permute.xlu0 %1510
        %1512 = vrot.lane.b32.xlu0 %v1478, 24
        %v1513 = vpop.permute.xlu0 %1512
        %v1517 = vsel %vm989, %v1353, %v1485
        %v1518 = vsel %vm989, %v1355, %v1487
        %v1519 = vsel %vm989, %v1358, %v1489
        %vm1520 = vcmask 130048
        %v1521 = vsel %vm1520, %v1517, %v1497
        %v1522 = vsel %vm1520, %v1518, %v1499
        %v1523 = vsel %vm1520, %v1519, %v1501
        %v1524 = vsel %vm1175, %v1521, %v1509
        %v1525 = vsel %vm1175, %v1522, %v1511
        %v1526 = vsel %vm1175, %v1523, %v1513
        %v1527 = vpack.c.bf16 %v1525, %v1524
        %v1528 = vpack.c.bf16 %v1526, %v1526
        %v1529 = vld [vmem:[%s697] sm:$0xf]
        %v1530 = vld [vmem:[%s697 + $0x4] sm:$0xf]
        %v1531 = vld [vmem:[%s697 + $0x8] sm:$0xf]
        %v1532 = vld [vmem:[%s697 + $0xc] sm:$0xf]
        %v1533 = vld [vmem:[%s700] sm:$0x1]
        %v1535 = vperm.slane %v1533, 0
        %v1541 = vunpack.c.l.b16 %v1529
        %v1542 = vunpack.c.l.b16 %v1530
        %v1543 = vunpack.c.l.b16 %v1531
        %v1544 = vunpack.c.l.b16 %v1532
        %v1545 = vpack.c.b16 %v1542, %v1541
        %v1546 = vpack.c.b16 %v1544, %v1543
        %v1550 = vsel %vm803, %v1527, 0
        %v1553 = vsel %vm803, %v1528, 0
        %1555 = vmatpush.bf16.msra.mxu0 0
        %1556 = vmatpush.bf16.msra.mxu0 0
        %1557 = vmatpush.bf16.msra.mxu0 0
        %1558 = vmatpush.bf16.msra.mxu0 0
        %1559 = vmatpush.bf16.msra.mxu0 0
        %1560 = vmatpush.bf16.msra.mxu0 0
        %1561 = vmatpush.bf16.msra.mxu0 %v1546
        %1562 = vmatpush.bf16.msra.mxu0 %v1545
        %1563 = vmatmul.bf16.gmra.mxu0 %v1550
        %v1564 = vpop.f32.mrf.mxu0
        %v1565 = vadd.f32 %v1535, %v1564
        %v1566 = vpop.f32.mrf.mxu0
        %v1567 = vadd.f32 %v1535, %v1566
        %1568 = vmatmul.bf16.gmra.mxu0 %v1553
        %v1569 = vpop.f32.mrf.mxu0
        %v1570 = vadd.f32 %v1535, %v1569
        %v1571 = vpop.f32.mrf.mxu0
        %1572 = vdwg.mxu0
        %v1573 = vadd.f32 %v798, %v1565
        %v1574 = vadd.f32 %v799, %v1567
        %v1575 = vadd.f32 %v800, %v1570
        %v1576 = vld [vmem:[%s703] sm:$0x1]
        %v1577 = vld [vmem:[%s706] sm:$0x1]
        %v1578 = vsel %vm803, %v1573, 0.0
        %1579 = vadd.xlane.f32.xlu0 %v1578
        %v1580 = vpop.xlane.xlu0 %1579
        %v1581 = vsel %vm803, %v1574, 0.0
        %1582 = vadd.xlane.f32.xlu0 %v1581
        %v1583 = vpop.xlane.xlu0 %1582
        %v1584 = vsel %vm803, %v1575, 0.0
        %1585 = vadd.xlane.f32.xlu0 %v1584
        %v1586 = vpop.xlane.xlu0 %1585
        %v1587 = vmul.f32 %v1580, %v819
        %v1588 = vmul.f32 %v1583, %v819
        %v1589 = vmul.f32 %v1586, %v819
        %v1590 = vsub.f32 %v1573, %v1587
        %v1591 = vsub.f32 %v1574, %v1588
        %v1592 = vsub.f32 %v1575, %v1589
        %v1593 = vmul.f32 %v1590, %v1590
        %v1594 = vmul.f32 %v1591, %v1591
        %v1595 = vmul.f32 %v1592, %v1592
        %v1596 = vsel %vm803, %v1593, 0.0
        %1597 = vadd.xlane.f32.xlu0 %v1596
        %v1598 = vpop.xlane.xlu0 %1597
        %v1599 = vsel %vm803, %v1594, 0.0
        %1600 = vadd.xlane.f32.xlu0 %v1599
        %v1601 = vpop.xlane.xlu0 %1600
        %v1602 = vsel %vm803, %v1595, 0.0
        %1603 = vadd.xlane.f32.xlu0 %v1602
        %v1604 = vpop.xlane.xlu0 %1603
        %v1605 = vmul.f32 %v1598, %v819
        %v1606 = vmul.f32 %v1601, %v819
        %v1607 = vmul.f32 %v1604, %v819
        %v1608 = vadd.f32 %v1605, 1e-05
        %v1609 = vadd.f32 %v1606, 1e-05
        %v1610 = vadd.f32 %v1607, 1e-05
        %v1611 = vrsqrt.pop %v1608
        %v1612 = vmul.f32 %v1611, %v1608
        %v1613 = vmul.f32 %v1612, %v1611
        %v1614 = vmul.f32 0.5, %v1613
        %v1615 = vsub.f32 1.5, %v1614
        %v1616 = vmul.f32 %v1611, %v1615
        %vm1617 = vweird.f32 %v1608
        %vm1618 = vweird.f32 %v1611
        %vm1619 = vmor %vm1617, %vm1618
        %v1620 = vsel %vm1619, %v1611, %v1616
        %v1621 = vrsqrt.pop %v1609
        %v1622 = vmul.f32 %v1621, %v1609
        %v1623 = vmul.f32 %v1622, %v1621
        %v1624 = vmul.f32 0.5, %v1623
        %v1625 = vsub.f32 1.5, %v1624
        %v1626 = vmul.f32 %v1621, %v1625
        %vm1627 = vweird.f32 %v1609
        %vm1628 = vweird.f32 %v1621
        %vm1629 = vmor %vm1627, %vm1628
        %v1630 = vsel %vm1629, %v1621, %v1626
        %v1631 = vrsqrt.pop %v1610
        %v1632 = vmul.f32 %v1631, %v1610
        %v1633 = vmul.f32 %v1632, %v1631
        %v1634 = vmul.f32 0.5, %v1633
        %v1635 = vsub.f32 1.5, %v1634
        %v1636 = vmul.f32 %v1631, %v1635
        %vm1637 = vweird.f32 %v1610
        %vm1638 = vweird.f32 %v1631
        %vm1639 = vmor %vm1637, %vm1638
        %v1640 = vsel %vm1639, %v1631, %v1636
        %v1641 = vmul.f32 %v1590, %v1620
        %v1642 = vmul.f32 %v1591, %v1630
        %v1643 = vmul.f32 %v1592, %v1640
        %v1645 = vperm.slane %v1576, 0
        %v1647 = vmul.f32 %v1641, %v1645
        %v1648 = vmul.f32 %v1642, %v1645
        %v1649 = vmul.f32 %v1643, %v1645
        %v1651 = vperm.slane %v1577, 0
        %v1653 = vadd.f32 %v1647, %v1651
        %v1654 = vadd.f32 %v1648, %v1651
        %v1655 = vadd.f32 %v1649, %v1651
        %v1656 = vpack.c.bf16 %v1654, %v1653
        %v1657 = vpack.c.bf16 %v1655, %v1655
        %v1658 = vld [vmem:[%s711] sm:$0xf]
        %v1659 = vld [vmem:[%s711 + $0x4] sm:$0xf]
        %v1660 = vld [vmem:[%s711 + $0x8] sm:$0xf]
        %v1661 = vld [vmem:[%s711 + $0xc] sm:$0xf]
        %v1662 = vld [vmem:[%s714] sm:$0x1]
        %v1664 = vperm.slane %v1662, 0
        %v1670 = vunpack.c.l.b16 %v1658
        %v1671 = vunpack.c.l.b16 %v1659
        %v1672 = vunpack.c.l.b16 %v1660
        %v1673 = vunpack.c.l.b16 %v1661
        %v1674 = vpack.c.b16 %v1671, %v1670
        %v1675 = vpack.c.b16 %v1673, %v1672
        %v1679 = vsel %vm803, %v1656, 0
        %v1682 = vsel %vm803, %v1657, 0
        %1684 = vmatpush.bf16.msra.mxu0 0
        %1685 = vmatpush.bf16.msra.mxu0 0
        %1686 = vmatpush.bf16.msra.mxu0 0
        %1687 = vmatpush.bf16.msra.mxu0 0
        %1688 = vmatpush.bf16.msra.mxu0 0
        %1689 = vmatpush.bf16.msra.mxu0 0
        %1690 = vmatpush.bf16.msra.mxu0 %v1675
        %1691 = vmatpush.bf16.msra.mxu0 %v1674
        %1692 = vmatmul.bf16.gmra.mxu0 %v1679
        %v1693 = vpop.f32.mrf.mxu0
        %v1694 = vadd.f32 %v1664, %v1693
        %v1695 = vpop.f32.mrf.mxu0
        %v1696 = vadd.f32 %v1664, %v1695
        %1697 = vmatmul.bf16.gmra.mxu0 %v1682
        %v1698 = vpop.f32.mrf.mxu0
        %v1699 = vadd.f32 %v1664, %v1698
        %v1700 = vpop.f32.mrf.mxu0
        %1701 = vdwg.mxu0
        %v1702 = vmul.f32 %v1694, 0.5
        %v1703 = vmul.f32 %v1696, 0.5
        %v1704 = vmul.f32 %v1699, 0.5
        %v1705 = vmul.f32 %v1694, 0.70710677
        %v1706 = vmul.f32 %v1696, 0.70710677
        %v1707 = vmul.f32 %v1699, 0.70710677
        %v1708 = vmul.f32 %v1705, %v1705
        %v1709 = vmin.f32 16.0, %v1708
        %v1710 = vmul.f32 %v1709, 2.1237322e-06
        %v1711 = vadd.f32 %v1710, 0.00028619796
        %v1712 = vmul.f32 %v1709, %v1711
        %v1713 = vadd.f32 %v1712, 0.0036580483
        %v1714 = vmul.f32 %v1709, %v1713
        %v1715 = vadd.f32 %v1714, 0.05243302
        %v1716 = vmul.f32 %v1709, %v1715
        %v1717 = vadd.f32 %v1716, 0.18741608
        %v1718 = vmul.f32 %v1709, %v1717
        %v1719 = vadd.f32 %v1718, 1.1283791
        %v1720 = vmul.f32 %v1705, %v1719
        %v1721 = vmul.f32 %v1709, 3.8918573e-05
        %v1722 = vadd.f32 %v1721, 0.001143296
        %v1723 = vmul.f32 %v1709, %v1722
        %v1724 = vadd.f32 %v1723, 0.014752088
        %v1725 = vmul.f32 %v1709, %v1724
        %v1726 = vadd.f32 %v1725, 0.112945676
        %v1727 = vmul.f32 %v1709, %v1726
        %v1728 = vadd.f32 %v1727, 0.4994258
        %v1729 = vmul.f32 %v1709, %v1728
        %v1730 = vadd.f32 %v1729, 1.0
        %v1731 = vrcp.pop %v1730
        %v1732 = vmul.f32 %v1730, %v1731
        %v1733 = vsub.f32 1.0, %v1732
        %v1734 = vmul.f32 %v1731, %v1733
        %v1735 = vadd.f32 %v1731, %v1734
        %vm1736 = vweird.f32 %v1730
        %vm1737 = vweird.f32 %v1731
        %vm1738 = vmor %vm1736, %vm1737
        %v1739 = vsel %vm1738, %v1731, %v1735
        %v1740 = vand.u32 2147483647, %v1730
        %vm1741 = vcmp.eq.f32.partialorder %v1740, 8.507059e+37
        %v1742 = vand.u32 %v1730, 2147483648
        %v1743 = vor.u32 1.1754944e-38, %v1742
        %v1744 = vsel %vm1741, %v1743, %v1739
        %v1745 = vmul.f32 %v1720, %v1744
        %v1746 = vmin.f32 %v1745, 1.0
        %v1747 = vmax.f32 %v1746, -1.0
        %v1748 = vmul.f32 %v1706, %v1706
        %v1749 = vmin.f32 16.0, %v1748
        %v1750 = vmul.f32 %v1749, 2.1237322e-06
        %v1751 = vadd.f32 %v1750, 0.00028619796
        %v1752 = vmul.f32 %v1749, %v1751
        %v1753 = vadd.f32 %v1752, 0.0036580483
        %v1754 = vmul.f32 %v1749, %v1753
        %v1755 = vadd.f32 %v1754, 0.05243302
        %v1756 = vmul.f32 %v1749, %v1755
        %v1757 = vadd.f32 %v1756, 0.18741608
        %v1758 = vmul.f32 %v1749, %v1757
        %v1759 = vadd.f32 %v1758, 1.1283791
        %v1760 = vmul.f32 %v1706, %v1759
        %v1761 = vmul.f32 %v1749, 3.8918573e-05
        %v1762 = vadd.f32 %v1761, 0.001143296
        %v1763 = vmul.f32 %v1749, %v1762
        %v1764 = vadd.f32 %v1763, 0.014752088
        %v1765 = vmul.f32 %v1749, %v1764
        %v1766 = vadd.f32 %v1765, 0.112945676
        %v1767 = vmul.f32 %v1749, %v1766
        %v1768 = vadd.f32 %v1767, 0.4994258
        %v1769 = vmul.f32 %v1749, %v1768
        %v1770 = vadd.f32 %v1769, 1.0
        %v1771 = vrcp.pop %v1770
        %v1772 = vmul.f32 %v1770, %v1771
        %v1773 = vsub.f32 1.0, %v1772
        %v1774 = vmul.f32 %v1771, %v1773
        %v1775 = vadd.f32 %v1771, %v1774
        %vm1776 = vweird.f32 %v1770
        %vm1777 = vweird.f32 %v1771
        %vm1778 = vmor %vm1776, %vm1777
        %v1779 = vsel %vm1778, %v1771, %v1775
        %v1780 = vand.u32 2147483647, %v1770
        %vm1781 = vcmp.eq.f32.partialorder %v1780, 8.507059e+37
        %v1782 = vand.u32 %v1770, 2147483648
        %v1783 = vor.u32 1.1754944e-38, %v1782
        %v1784 = vsel %vm1781, %v1783, %v1779
        %v1785 = vmul.f32 %v1760, %v1784
        %v1786 = vmin.f32 %v1785, 1.0
        %v1787 = vmax.f32 %v1786, -1.0
        %v1788 = vmul.f32 %v1707, %v1707
        %v1789 = vmin.f32 16.0, %v1788
        %v1790 = vmul.f32 %v1789, 2.1237322e-06
        %v1791 = vadd.f32 %v1790, 0.00028619796
        %v1792 = vmul.f32 %v1789, %v1791
        %v1793 = vadd.f32 %v1792, 0.0036580483
        %v1794 = vmul.f32 %v1789, %v1793
        %v1795 = vadd.f32 %v1794, 0.05243302
        %v1796 = vmul.f32 %v1789, %v1795
        %v1797 = vadd.f32 %v1796, 0.18741608
        %v1798 = vmul.f32 %v1789, %v1797
        %v1799 = vadd.f32 %v1798, 1.1283791
        %v1800 = vmul.f32 %v1707, %v1799
        %v1801 = vmul.f32 %v1789, 3.8918573e-05
        %v1802 = vadd.f32 %v1801, 0.001143296
        %v1803 = vmul.f32 %v1789, %v1802
        %v1804 = vadd.f32 %v1803, 0.014752088
        %v1805 = vmul.f32 %v1789, %v1804
        %v1806 = vadd.f32 %v1805, 0.112945676
        %v1807 = vmul.f32 %v1789, %v1806
        %v1808 = vadd.f32 %v1807, 0.4994258
        %v1809 = vmul.f32 %v1789, %v1808
        %v1810 = vadd.f32 %v1809, 1.0
        %v1811 = vrcp.pop %v1810
        %v1812 = vmul.f32 %v1810, %v1811
        %v1813 = vsub.f32 1.0, %v1812
        %v1814 = vmul.f32 %v1811, %v1813
        %v1815 = vadd.f32 %v1811, %v1814
        %vm1816 = vweird.f32 %v1810
        %vm1817 = vweird.f32 %v1811
        %vm1818 = vmor %vm1816, %vm1817
        %v1819 = vsel %vm1818, %v1811, %v1815
        %v1820 = vand.u32 2147483647, %v1810
        %vm1821 = vcmp.eq.f32.partialorder %v1820, 8.507059e+37
        %v1822 = vand.u32 %v1810, 2147483648
        %v1823 = vor.u32 1.1754944e-38, %v1822
        %v1824 = vsel %vm1821, %v1823, %v1819
        %v1825 = vmul.f32 %v1800, %v1824
        %v1826 = vmin.f32 %v1825, 1.0
        %v1827 = vmax.f32 %v1826, -1.0
        %v1828 = vadd.f32 %v1747, 1.0
        %v1829 = vadd.f32 %v1787, 1.0
        %v1830 = vadd.f32 %v1827, 1.0
        %v1831 = vmul.f32 %v1702, %v1828
        %v1832 = vmul.f32 %v1703, %v1829
        %v1833 = vmul.f32 %v1704, %v1830
        %v1834 = vpack.c.bf16 %v1832, %v1831
        %v1835 = vpack.c.bf16 %v1833, %v1833
        %v1836 = vld [vmem:[%s719] sm:$0xf]
        %v1837 = vld [vmem:[%s719 + $0x4] sm:$0xf]
        %v1838 = vld [vmem:[%s719 + $0x8] sm:$0xf]
        %v1839 = vld [vmem:[%s719 + $0xc] sm:$0xf]
        %v1840 = vld [vmem:[%s719 + $0x10] sm:$0xf]
        %v1841 = vld [vmem:[%s719 + $0x14] sm:$0xf]
        %v1842 = vld [vmem:[%s719 + $0x18] sm:$0xf]
        %v1843 = vld [vmem:[%s719 + $0x1c] sm:$0xf]
        %v1844 = vld [vmem:[%s719 + $0x20] sm:$0xf]
        %v1845 = vld [vmem:[%s719 + $0x24] sm:$0xf]
        %v1846 = vld [vmem:[%s719 + $0x28] sm:$0xf]
        %v1847 = vld [vmem:[%s719 + $0x2c] sm:$0xf]
        %v1848 = vld [vmem:[%s719 + $0x30] sm:$0xf]
        %v1849 = vld [vmem:[%s719 + $0x34] sm:$0xf]
        %v1850 = vld [vmem:[%s719 + $0x38] sm:$0xf]
        %v1851 = vld [vmem:[%s719 + $0x3c] sm:$0xf]
        %v1852 = vld [vmem:[%s722] sm:$0x1]
        %v1854 = vperm.slane %v1852, 0
        %v1872 = vunpack.c.l.b16 %v1836
        %v1873 = vunpack.c.l.b16 %v1837
        %v1874 = vunpack.c.l.b16 %v1838
        %v1875 = vunpack.c.l.b16 %v1839
        %v1876 = vunpack.c.l.b16 %v1840
        %v1877 = vunpack.c.l.b16 %v1841
        %v1878 = vunpack.c.l.b16 %v1842
        %v1879 = vunpack.c.l.b16 %v1843
        %v1880 = vunpack.c.l.b16 %v1844
        %v1881 = vunpack.c.l.b16 %v1845
        %v1882 = vunpack.c.l.b16 %v1846
        %v1883 = vunpack.c.l.b16 %v1847
        %v1884 = vunpack.c.l.b16 %v1848
        %v1885 = vunpack.c.l.b16 %v1849
        %v1886 = vunpack.c.l.b16 %v1850
        %v1887 = vunpack.c.l.b16 %v1851
        %v1888 = vpack.c.b16 %v1873, %v1872
        %v1889 = vpack.c.b16 %v1875, %v1874
        %v1890 = vpack.c.b16 %v1877, %v1876
        %v1891 = vpack.c.b16 %v1879, %v1878
        %v1892 = vpack.c.b16 %v1881, %v1880
        %v1893 = vpack.c.b16 %v1883, %v1882
        %v1894 = vpack.c.b16 %v1885, %v1884
        %v1895 = vpack.c.b16 %v1887, %v1886
        %1904 = vmatpush.bf16.msra.mxu0 %v1895
        %1905 = vmatpush.bf16.msra.mxu0 %v1894
        %1906 = vmatpush.bf16.msra.mxu0 %v1893
        %1907 = vmatpush.bf16.msra.mxu0 %v1892
        %1908 = vmatpush.bf16.msra.mxu0 %v1891
        %1909 = vmatpush.bf16.msra.mxu0 %v1890
        %1910 = vmatpush.bf16.msra.mxu0 %v1889
        %1911 = vmatpush.bf16.msra.mxu0 %v1888
        %1912 = vmatmul.bf16.gmra.mxu0 %v1834
        %v1913 = vpop.f32.mrf.mxu0
        %v1914 = vadd.f32 %v1854, %v1913
        %v1915 = vpop.f32.mrf.mxu0
        %v1916 = vadd.f32 %v1854, %v1915
        %1917 = vmatmul.bf16.gmra.mxu0 %v1835
        %v1918 = vpop.f32.mrf.mxu0
        %v1919 = vadd.f32 %v1854, %v1918
        %v1920 = vpop.f32.mrf.mxu0
        %1921 = vdwg.mxu0
        %v1922 = vadd.f32 %v1573, %v1914
        %v1923 = vadd.f32 %v1574, %v1916
        %v1924 = vadd.f32 %v1575, %v1919
        %1925 = vst.msk [vmem:[#allocation2] sm:$0xff] %vm803, %v1922
        %1926 = vst.msk [vmem:[#allocation2 + $0x8] sm:$0xff] %vm803, %v1923
        %1927 = vst.msk [vmem:[#allocation2 + $0x10] sm:$0xff] %vm803, %v1924
        %p1928 = scmp.eq.s32.totalorder %s35, 1
        // Predicated region
        $region89: #{image_encoder_forward.1} parent=83 // pred_check
          %p1929 = pneg %p1928
        $region90: #{image_encoder_forward.1} parent=83 // pred_check_branch
          %1931 = sbr.rel (%p1929) target = $region92
        $region91: #{image_encoder_forward.1} parent=83 // pred_region
          %v1932 = vpack.c.bf16 %v1922, %v1922
          %v1933 = vld [vmem:[%s15] sm:$0xf]
          %v1934 = vld [vmem:[%s15 + $0x4] sm:$0xf]
          %v1935 = vld [vmem:[%s15 + $0x8] sm:$0xf]
          %v1936 = vld [vmem:[%s15 + $0xc] sm:$0xf]
          %v1941 = vunpack.c.l.b16 %v1933
          %v1942 = vunpack.c.l.b16 %v1934
          %v1943 = vunpack.c.l.b16 %v1935
          %v1944 = vunpack.c.l.b16 %v1936
          %v1945 = vpack.c.b16 %v1942, %v1941
          %v1946 = vpack.c.b16 %v1944, %v1943
          %v1950 = vsel %vm803, %v1932, 0
          %1952 = vmatpush.bf16.msra.mxu0 0
          %1953 = vmatpush.bf16.msra.mxu0 0
          %1954 = vmatpush.bf16.msra.mxu0 0
          %1955 = vmatpush.bf16.msra.mxu0 0
          %1956 = vmatpush.bf16.msra.mxu0 0
          %1957 = vmatpush.bf16.msra.mxu0 0
          %1958 = vmatpush.bf16.msra.mxu0 %v1946
          %1959 = vmatpush.bf16.msra.mxu0 %v1945
          %1960 = vmatmul.bf16.gmra.mxu0 %v1950
          %v1961 = vpop.f32.mrf.mxu0
          %v1962 = vadd.f32 0.0, %v1961
          %v1963 = vpop.f32.mrf.mxu0
          %1964 = vdwg.mxu0
          %v1965 = vmul.f32 %v1962, %v1962
          %vm1966 = vcmask 1040384
          %v1967 = vsel %vm1966, %v1965, 0.0
          %1968 = vadd.xlane.f32.xlu0 %v1967
          %v1969 = vpop.xlane.xlu0 %1968
          %v1970 = vadd.f32 %v1969, 1e-12
          %v1971 = vrsqrt.pop %v1970
          %v1972 = vmul.f32 %v1971, %v1970
          %v1973 = vmul.f32 %v1972, %v1971
          %v1974 = vmul.f32 0.5, %v1973
          %v1975 = vsub.f32 1.5, %v1974
          %v1976 = vmul.f32 %v1971, %v1975
          %vm1977 = vweird.f32 %v1970
          %vm1978 = vweird.f32 %v1971
          %vm1979 = vmor %vm1977, %vm1978
          %v1980 = vsel %vm1979, %v1971, %v1976
          %v1981 = vmul.f32 %v1962, %v1980
          %1982 = vst [vmem:[%s673] sm:$0x1] %v1981
        $region92: #{image_encoder_forward.1} parent=83 // pred_fallthru
          _
        %s1983 = sand.u32 %s451, 1
        %s1984 = scalar_lea.sflag [#allocation4], %s1983
        %s1985 = sand.u32 %s451, 1
        %s1986 = scalar_lea.vmem [#allocation3], %s1985
        // Predicated region
        $region93: #{image_encoder_forward.1} parent=83 // pred_check
          %p1987 = pneg %p461
        $region94: #{image_encoder_forward.1} parent=83 // pred_check_branch
          %1989 = sbr.rel (%p1987) target = $region96
        $region95: #{image_encoder_forward.1} parent=83 // pred_region
          %1991 = vsyncadd %s1984, 0
          %s1992 = scalar_lea.hbm %s16, %s34
          %s1994 = sshll.u32 %s1986, 4
          %s1995 = int_to_ptr.vmem [resolvable:$true] %s1994
          %s1996 = sshll.u32 %s1992, 4
          %s1997 = int_to_ptr.hbm [resolvable:$true] %s1996
          %1999 = dma.vmem_to_hbm [thread:$0]  %s1995, 16, %s1997, %s1984
        $region96: #{image_encoder_forward.1} parent=83 // pred_fallthru
          _
      $region84: #{image_encoder_forward.1} parent=5 // pred_fallthru
        _
      %p2000 = scmp.le.s32.totalorder 2, %s25
      // Predicated region
      $region97: #{image_encoder_forward.1} parent=5 // pred_check
        %p2001 = pneg %p2000
      $region98: #{image_encoder_forward.1} parent=5 // pred_check_branch
        %2003 = sbr.rel (%p2001) target = $region100
      $region99: #{image_encoder_forward.1} parent=5 // pred_region
        %s2004 = ssub.s32 %s25, 2
        // Predicated region
        $region101: #{image_encoder_forward.1} parent=99 // pred_check
          %p2005 = pneg %p467
        $region102: #{image_encoder_forward.1} parent=99 // pred_check_branch
          %2007 = sbr.rel (%p2005) target = $region104
        $region103: #{image_encoder_forward.1} parent=99 // pred_region
          %s2008 = sand.u32 %s452, 1
          %s2009 = scalar_lea.sflag [#allocation4], %s2008
          %s2010 = sand.u32 %s452, 1
          %s2011 = scalar_lea.vmem [#allocation3], %s2010
          %2013 = dma.done %s2009, 16
        $region104: #{image_encoder_forward.1} parent=99 // pred_fallthru
          _
      $region100: #{image_encoder_forward.1} parent=5 // pred_fallthru
        _
    $region6: #{image_encoder_forward.1} parent=1 // loop_footer
      %s29 = sadd.s32 1, %s25
    $region7: #{image_encoder_forward.1} parent=1 // loop_footer_branch
      %24 = sbr.rel target = $region3
    $region8: #{image_encoder_forward.1} parent=1 // loop_exit
      _
    %2014 = vsyncpa [#allocation4], 1
    %s2015 = scalar_lea.sflag [#allocation4], 1
    %2016 = vsyncpa %s2015, 1

</llo_original>
